<compile_context>
chip_gen: v7x
topology: tpu7x:2x2x1
jax: 0.10.0
libtpu: 0.0.40
codegen_flags: <defaults>
</compile_context>

<pallas_src>
import math
from functools import partial

import jax
import jax.numpy as jnp
from jax import lax
from jax.experimental import pallas as pl
from jax.experimental.pallas import tpu as pltpu

EPS_LN = 1e-5     # ChanLayerNorm2D eps
EPS_L2 = 1e-12    # F.normalize default eps


# ------------------------------ shared helpers ------------------------------

def _chan_ln(x, g, b):
    """Channel LayerNorm over the last axis (biased variance), f32 math."""
    mean = jnp.mean(x, axis=-1, keepdims=True)
    var = jnp.mean((x - mean) ** 2, axis=-1, keepdims=True)
    return (x - mean) * lax.rsqrt(var + EPS_LN) * g + b


def _vmem_cap_bytes():
    """Physical VMEM of the current generation (fallback: 64 MiB = v7x)."""
    try:
        return int(pltpu.get_tpu_info().vmem_capacity_bytes)
    except Exception:
        return 64 << 20


def _block_target_bytes():
    """Target bytes for the dominant per-step block (gen-aware)."""
    cap = _vmem_cap_bytes()
    return int(min(4 << 20, max(1 << 20, cap // 48)))


def _vmem_limit_bytes(working_set_bytes):
    """Scoped-VMEM limit for a pallas_call (raised above v5e's 16 MiB default)."""
    cap = _vmem_cap_bytes()
    want = 4 * int(working_set_bytes) + (8 << 20)
    return int(min(max(want, 32 << 20), int(cap * 0.9)))


def _choose_l_tile(L, row_bytes, target_bytes):
    """Largest L-tile (multiple of 8 sublanes) dividing L with block <= target bytes."""
    max_rows = min(2048, max(8, target_bytes // max(int(row_bytes), 1)))
    if L <= max_rows:
        return L
    start = int(max_rows) - int(max_rows) % 8
    for t in range(start, 7, -8):
        if L % t == 0:
            return t
    return L


# ----------------------------- Pallas kernels -----------------------------

def _ln_proj_q_kernel(x_ref, g_ref, b_ref, w_ref, q_ref, *, heads, scale):
    """Chan-LN (once) + per-head to_q matmul + per-head L2 norm (+ scale fold)."""
    xn = _chan_ln(x_ref[0], g_ref[...], b_ref[...]).astype(jnp.bfloat16)     # (TL, C)
    for h in range(heads):                                                   # small static loop
        y = jnp.dot(xn, w_ref[h], preferred_element_type=jnp.float32)        # (TL, dh) f32
        ss = jnp.sum(y * y, axis=-1, keepdims=True)
        yn = y * lax.rsqrt(jnp.maximum(ss, EPS_L2 * EPS_L2))
        q_ref[0, h] = (yn * scale).astype(q_ref.dtype)                       # softmax scale folded into q


def _ln_proj_kv_kernel(x_ref, g_ref, b_ref, wk_ref, wv_ref, k_ref, v_ref, *, heads):
    """Chan-LN computed ONCE + per-head to_k / to_v matmuls; k gets per-head L2 norm."""
    xn = _chan_ln(x_ref[0], g_ref[...], b_ref[...]).astype(jnp.bfloat16)     # (TL, C)
    for h in range(heads):
        yk = jnp.dot(xn, wk_ref[h], preferred_element_type=jnp.float32)      # (TL, dh)
        ss = jnp.sum(yk * yk, axis=-1, keepdims=True)
        k_ref[0, h] = (yk * lax.rsqrt(jnp.maximum(ss, EPS_L2 * EPS_L2))).astype(k_ref.dtype)
        v_ref[0, h] = jnp.dot(xn, wv_ref[h],
                              preferred_element_type=jnp.float32).astype(v_ref.dtype)


def _attn_out_kernel(q_ref, k_ref, v_ref, w_ref, g_ref, b_ref, res_ref, gamma_ref,
                     o_ref, acc_ref):
    """Fused per-(batch, q-tile, head) attention + output projection.

    `heads` is the innermost reduction grid axis: each step accumulates
    o_h @ w_out_h into the f32 scratch; LN + gamma*y + residual run at the
    last head, so the attention output never round-trips HBM.
    """
    h = pl.program_id(2)

    @pl.when(h == 0)
    def _():
        acc_ref[...] = jnp.zeros_like(acc_ref)

    q = q_ref[0, 0]                                                          # (TQ, dh) bf16, pre-scaled
    k = k_ref[0, 0]                                                          # (Lk, dh) bf16
    v = v_ref[0, 0]                                                          # (Lk, dh) bf16
    # contract last dims directly (no k.T materialization)
    s = lax.dot_general(q, k, (((1,), (1,)), ((), ())),
                        preferred_element_type=jnp.float32)                  # (TQ, Lk) f32
    m = jnp.max(s, axis=-1, keepdims=True)
    p = jnp.exp(s - m)
    denom = jnp.sum(p, axis=-1, keepdims=True)
    p = p * pl.reciprocal(denom, approx=True)                                # EUP, frees VALU
    o = jnp.dot(p.astype(jnp.bfloat16), v, preferred_element_type=jnp.float32)   # (TQ, dh)
    acc_ref[...] += jnp.dot(o.astype(jnp.bfloat16), w_ref[0],
                            preferred_element_type=jnp.float32)              # (TQ, C)

    @pl.when(h == pl.num_programs(2) - 1)
    def _():
        yn = _chan_ln(acc_ref[...], g_ref[...], b_ref[...])
        o_ref[0] = gamma_ref[0, 0] * yn + res_ref[0]


# ----------------------------- kernel wrappers -----------------------------

def ln_proj_q(x, g, b, w_q_h, scale):
    B, L, C = x.shape
    heads, _, dh = w_q_h.shape
    TL = _choose_l_tile(L, 3 * C * 4 + 2 * heads * dh * 2, _block_target_bytes())
    est = (2 * TL * C * 4 + heads * C * dh * 2 + 2 * heads * TL * dh * 2
           + 2 * TL * C * 4 + 4 * TL * dh * 4)
    return pl.pallas_call(
        partial(_ln_proj_q_kernel, heads=heads, scale=scale),
        out_shape=jax.ShapeDtypeStruct((B, heads, L, dh), jnp.bfloat16),
        grid=(B, L // TL),
        in_specs=[
            pl.BlockSpec((1, TL, C), lambda i, j: (i, j, 0)),
            pl.BlockSpec((1, C), lambda i, j: (0, 0)),
            pl.BlockSpec((1, C), lambda i, j: (0, 0)),
            pl.BlockSpec((heads, C, dh), lambda i, j: (0, 0, 0)),
        ],
        out_specs=pl.BlockSpec((1, heads, TL, dh), lambda i, j: (i, 0, j, 0)),
        compiler_params=pltpu.CompilerParams(
            dimension_semantics=("parallel", "parallel"),
            vmem_limit_bytes=_vmem_limit_bytes(est)),
    )(x, g, b, w_q_h)


def ln_proj_kv(x, g, b, w_k_h, w_v_h):
    B, L, C = x.shape
    heads, _, dh = w_k_h.shape
    TL = _choose_l_tile(L, 3 * C * 4 + 4 * heads * dh * 2, _block_target_bytes())
    est = (2 * TL * C * 4 + 2 * heads * C * dh * 2 + 4 * heads * TL * dh * 2
           + 2 * TL * C * 4 + 4 * TL * dh * 4)
    return pl.pallas_call(
        partial(_ln_proj_kv_kernel, heads=heads),
        out_shape=(jax.ShapeDtypeStruct((B, heads, L, dh), jnp.bfloat16),
                   jax.ShapeDtypeStruct((B, heads, L, dh), jnp.bfloat16)),
        grid=(B, L // TL),
        in_specs=[
            pl.BlockSpec((1, TL, C), lambda i, j: (i, j, 0)),
            pl.BlockSpec((1, C), lambda i, j: (0, 0)),
            pl.BlockSpec((1, C), lambda i, j: (0, 0)),
            pl.BlockSpec((heads, C, dh), lambda i, j: (0, 0, 0)),
            pl.BlockSpec((heads, C, dh), lambda i, j: (0, 0, 0)),
        ],
        out_specs=(pl.BlockSpec((1, heads, TL, dh), lambda i, j: (i, 0, j, 0)),
                   pl.BlockSpec((1, heads, TL, dh), lambda i, j: (i, 0, j, 0))),
        compiler_params=pltpu.CompilerParams(
            dimension_semantics=("parallel", "parallel"),
            vmem_limit_bytes=_vmem_limit_bytes(est)),
    )(x, g, b, w_k_h, w_v_h)


def attn_out(q, k, v, w_out_h, g, b, gamma, res):
    """Fused attention + to_out + out-LN + gamma*out + residual."""
    B, heads, Lq, dh = q.shape
    Lk = k.shape[2]
    C = w_out_h.shape[2]
    # TODO(synk): for very long (unpruned) contexts on v7x (64 MiB VMEM), tile over Lk
    # with an online-softmax accumulator instead of materializing full-row scores.
    TQ = _choose_l_tile(Lq, 3 * Lk * 4 + 3 * C * 4 + 4 * dh * 2, _block_target_bytes())
    est = (2 * TQ * dh * 2 + 4 * Lk * dh * 2 + 2 * dh * C * 2
           + 4 * TQ * C * 4 + TQ * C * 4 + 3 * TQ * Lk * 4 + 2 * TQ * dh * 4)
    return pl.pallas_call(
        _attn_out_kernel,
        out_shape=jax.ShapeDtypeStruct((B, Lq, C), jnp.float32),
        grid=(B, Lq // TQ, heads),
        in_specs=[
            pl.BlockSpec((1, 1, TQ, dh), lambda i, j, h: (i, h, j, 0)),
            pl.BlockSpec((1, 1, Lk, dh), lambda i, j, h: (i, h, 0, 0)),
            pl.BlockSpec((1, 1, Lk, dh), lambda i, j, h: (i, h, 0, 0)),
            pl.BlockSpec((1, dh, C), lambda i, j, h: (h, 0, 0)),
            pl.BlockSpec((1, C), lambda i, j, h: (0, 0)),
            pl.BlockSpec((1, C), lambda i, j, h: (0, 0)),
            pl.BlockSpec((1, TQ, C), lambda i, j, h: (i, j, 0)),
            pl.BlockSpec(memory_space=pltpu.MemorySpace.SMEM),   # gamma scalar
        ],
        out_specs=pl.BlockSpec((1, TQ, C), lambda i, j, h: (i, j, 0)),
        scratch_shapes=[pltpu.VMEM((TQ, C), jnp.float32)],
        compiler_params=pltpu.CompilerParams(
            # batch & q-tiles shard across TensorCores (v7x megacore); heads is the
            # out-projection reduction axis, so it stays "arbitrary".
            dimension_semantics=("parallel", "parallel", "arbitrary"),
            vmem_limit_bytes=_vmem_limit_bytes(est)),
    )(q, k, v, w_out_h, g, b, res, gamma)


# --------------------------- pure-JAX references ---------------------------
# (mirror the kernels' precision choices: bf16 MXU inputs, f32 accumulation)

def ln_proj_q_ref(x, g, b, w_q_h, scale):
    xn = _chan_ln(x, g, b).astype(jnp.bfloat16)
    y = jnp.einsum('blc,hcd->bhld', xn, w_q_h, preferred_element_type=jnp.float32)
    ss = jnp.sum(y * y, axis=-1, keepdims=True)
    return (y * lax.rsqrt(jnp.maximum(ss, EPS_L2 * EPS_L2)) * scale).astype(jnp.bfloat16)


def ln_proj_kv_ref(x, g, b, w_k_h, w_v_h):
    xn = _chan_ln(x, g, b).astype(jnp.bfloat16)
    yk = jnp.einsum('blc,hcd->bhld', xn, w_k_h, preferred_element_type=jnp.float32)
    ss = jnp.sum(yk * yk, axis=-1, keepdims=True)
    k = (yk * lax.rsqrt(jnp.maximum(ss, EPS_L2 * EPS_L2))).astype(jnp.bfloat16)
    v = jnp.einsum('blc,hcd->bhld', xn, w_v_h,
                   preferred_element_type=jnp.float32).astype(jnp.bfloat16)
    return k, v


def attn_out_ref(q, k, v, w_out_h, g, b, gamma, res):
    s = jnp.einsum('bhqd,bhkd->bhqk', q, k, preferred_element_type=jnp.float32)
    m = jnp.max(s, axis=-1, keepdims=True)
    p = jnp.exp(s - m)
    p = p / jnp.sum(p, axis=-1, keepdims=True)
    o = jnp.einsum('bhqk,bhkd->bhqd', p.astype(jnp.bfloat16), v,
                   preferred_element_type=jnp.float32)
    y = jnp.einsum('bhqd,hdc->bqc', o.astype(jnp.bfloat16), w_out_h,
                   preferred_element_type=jnp.float32)
    yn = _chan_ln(y, g, b)
    return gamma[0, 0] * yn + res


# -------------------------- dual pruning (shared glue) --------------------------

def _dual_prune(q, k, v, heads, dim_head, Hc, Wc, h_top, w_top):
    """Dual-pruning top-k row/col selection; q/k/v are (B, heads, L, dim_head)."""
    need_h = h_top < Hc
    need_w = w_top < Wc
    if not (need_h or need_w):
        return k, v
    B = q.shape[0]
    k5 = k.reshape(B, heads, Hc, Wc, dim_head)
    v5 = v.reshape(B, heads, Hc, Wc, dim_head)
    k_abs = jnp.abs(k5).astype(jnp.float32)                              # pre-gather, like the original
    q_probe = jnp.sum(q.astype(jnp.float32), axis=2)                     # (B, H, dh)
    if need_h:
        k_height = jnp.sum(k_abs, axis=3)                                # (B, H, Hc, dh)
        score_r = jnp.einsum('bhd,bhrd->bhr', q_probe, k_height)         # (B, H, Hc)
        _, idx_h = lax.top_k(score_r, h_top)                             # (B, H, h_top)
        idx = idx_h[:, :, :, None, None]
        k5 = jnp.take_along_axis(k5, idx, axis=2)
        v5 = jnp.take_along_axis(v5, idx, axis=2)
    if need_w:
        # NOTE: mirrors the original einsum('b h, b c w -> b w', ...) exactly,
        # which sums q_probe and the channel axis independently (no contraction).
        k_width = jnp.sum(k_abs, axis=2)                                 # (B, H, Wc, dh)
        score_c = jnp.sum(q_probe, axis=-1)[:, :, None] * jnp.sum(k_width, axis=-1)  # (B, H, Wc)
        _, idx_w = lax.top_k(score_c, w_top)                             # (B, H, w_top)
        idx = idx_w[:, :, None, :, None]
        k5 = jnp.take_along_axis(k5, idx, axis=3)
        v5 = jnp.take_along_axis(v5, idx, axis=3)
    Lk = k5.shape[2] * k5.shape[3]
    return (k5.reshape(B, heads, Lk, dim_head),
            v5.reshape(B, heads, Lk, dim_head))


# ------------------------------ parameter prep ------------------------------

def prepare_params(raw, heads, dim_head):
    """One-time weight prep: head-major layouts + bf16 casts (hoisted out of forward)."""
    C = raw['w_q'].shape[0]

    def _per_head_in(w):          # (C, heads*dim_head) -> (heads, C, dim_head)
        return jnp.transpose(w.reshape(C, heads, dim_head), (1, 0, 2)).astype(jnp.bfloat16)

    return dict(
        qs_g=raw['qs_g'], qs_b=raw['qs_b'],
        ctx_g=raw['ctx_g'], ctx_b=raw['ctx_b'],
        out_g=raw['out_g'], out_b=raw['out_b'],
        gamma=raw['gamma'],
        w_q_h=_per_head_in(raw['w_q']),
        w_k_h=_per_head_in(raw['w_k']),
        w_v_h=_per_head_in(raw['w_v']),
        w_out_h=raw['w_out'].reshape(heads, dim_head, C).astype(jnp.bfloat16),
    )


# ------------------------------ DPCA2D forward ------------------------------

def dpca2d_forward(query_source, context, prepped, heads, dim_head,
                   top_k=-1, use_pallas=True):
    b, c, Hq, Wq = query_source.shape
    _, _, Hc, Wc = context.shape
    Lq, Lc = Hq * Wq, Hc * Wc
    h_top = top_k if top_k > 0 else int(Hc ** 0.5)
    w_top = top_k if top_k > 0 else int(Wc ** 0.5)
    scale = 1.0 / math.sqrt(dim_head)     # torch SDPA default scale (folded into q)

    # TODO(synk): fold NCHW<->channel-last into the kernels (DMA (1, C, TL) blocks +
    # in-VMEM transpose) to remove these XLA-side HBM passes.
    qs_l = jnp.transpose(query_source, (0, 2, 3, 1)).reshape(b, Lq, c).astype(jnp.float32)
    ctx_l = jnp.transpose(context, (0, 2, 3, 1)).reshape(b, Lc, c).astype(jnp.float32)

    if use_pallas:
        q = ln_proj_q(qs_l, prepped['qs_g'], prepped['qs_b'], prepped['w_q_h'], scale)
        k, v = ln_proj_kv(ctx_l, prepped['ctx_g'], prepped['ctx_b'],
                          prepped['w_k_h'], prepped['w_v_h'])
    else:
        q = ln_proj_q_ref(qs_l, prepped['qs_g'], prepped['qs_b'], prepped['w_q_h'], scale)
        k, v = ln_proj_kv_ref(ctx_l, prepped['ctx_g'], prepped['ctx_b'],
                              prepped['w_k_h'], prepped['w_v_h'])

    # TODO(synk): dual-pruning top-k + data-dependent gather stays in plain JAX; an
    # SMEM-prefetched index table + DMA gather inside attn_out would remove the extra
    # HBM round trip of the pruned K/V.
    k, v = _dual_prune(q, k, v, heads, dim_head, Hc, Wc, h_top, w_top)

    if use_pallas:
        y = attn_out(q, k, v, prepped['w_out_h'], prepped['out_g'], prepped['out_b'],
                     prepped['gamma'], qs_l)
    else:
        y = attn_out_ref(q, k, v, prepped['w_out_h'], prepped['out_g'], prepped['out_b'],
                         prepped['gamma'], qs_l)

    # back to NCHW
    return jnp.transpose(y.reshape(b, Hq, Wq, c), (0, 3, 1, 2))


# ----------------------------------- main -----------------------------------

if __name__ == "__main__":
    b, dim, heads, dim_head = 2, 8, 4, 4          # inner_dim = 16
    Hq = Wq = 8
    Hc = Wc = 16                                  # top_k=-1 -> height/width top-k = 4

    key = jax.random.PRNGKey(0)
    k_in1, k_in2, k0, k1, k2, k3 = jax.random.split(key, 6)
    inner = heads * dim_head

    raw_params = dict(
        ctx_g=jnp.ones((1, dim), jnp.float32), ctx_b=jnp.zeros((1, dim), jnp.float32),
        qs_g=jnp.ones((1, dim), jnp.float32), qs_b=jnp.zeros((1, dim), jnp.float32),
        out_g=jnp.ones((1, dim), jnp.float32), out_b=jnp.zeros((1, dim), jnp.float32),
        w_q=0.1 * jax.random.normal(k0, (dim, inner), jnp.float32),
        w_k=0.1 * jax.random.normal(k1, (dim, inner), jnp.float32),
        w_v=0.1 * jax.random.normal(k2, (dim, inner), jnp.float32),
        w_out=0.1 * jax.random.normal(k3, (inner, dim), jnp.float32),
        # PyTorch initializes gamma = 0 (output == residual); use 0.5 so the fused path is exercised.
        gamma=jnp.full((1, 1), 0.5, jnp.float32),
    )
    prepped = prepare_params(raw_params, heads, dim_head)

    query_source = jax.random.normal(k_in1, (b, dim, Hq, Wq), jnp.float32)
    context = jax.random.normal(k_in2, (b, dim, Hc, Wc), jnp.float32)

    out = dpca2d_forward(query_source, context, prepped, heads, dim_head, use_pallas=True)
    out = jax.block_until_ready(out)

    # sanity check against a pure-JAX reference of the same (mixed-precision) forward
    ref = dpca2d_forward(query_source, context, prepped, heads, dim_head, use_pallas=False)
    ref = jax.block_until_ready(ref)

    assert out.shape == query_source.shape
    max_diff = float(jnp.max(jnp.abs(out - ref)))
    # bf16 MXU operands + approx softmax reciprocal -> tolerance loosened vs pure-f32.
    assert jnp.allclose(out, ref, rtol=2e-2, atol=2e-2), max_diff

    print("KERNEL_OK")
</pallas_src>

<mosaic_0001>
module attributes {stable_mosaic.version = 11 : i64} {
  func.func @_ln_proj_q_kernel(%arg0: i32, %arg1: i32, %arg2: memref<1x64x8xf32, #tpu.memory_space<vmem>>, %arg3: memref<1x8xf32, #tpu.memory_space<vmem>>, %arg4: memref<1x8xf32, #tpu.memory_space<vmem>>, %arg5: memref<4x8x4xbf16, #tpu.memory_space<vmem>>, %arg6: memref<1x4x64x4xbf16, #tpu.memory_space<vmem>>) attributes {dimension_semantics = [#tpu.dimension_semantics<parallel>, #tpu.dimension_semantics<parallel>], iteration_bounds = array<i64: 2, 1>, scalar_prefetch = 0 : i64, scratch_operands = 0 : i64, tpu.core_type = #tpu.core_type<tc>, window_params = [{transform_indices = @transform_0, window_bounds = array<i64: 1, 64, 8>}, {pipeline_mode = #tpu.pipeline_mode<synchronous>, transform_indices = @transform_1, window_bounds = array<i64: 1, 8>}, {pipeline_mode = #tpu.pipeline_mode<synchronous>, transform_indices = @transform_2, window_bounds = array<i64: 1, 8>}, {pipeline_mode = #tpu.pipeline_mode<synchronous>, transform_indices = @transform_3, window_bounds = array<i64: 4, 8, 4>}, {transform_indices = @transform_4, window_bounds = array<i64: 1, 4, 64, 4>}]} {
    %c0 = arith.constant 0 : index
    %c0_0 = arith.constant 0 : index
    %c0_1 = arith.constant 0 : index
    %0 = vector.load %arg2[%c0, %c0_0, %c0_1] : memref<1x64x8xf32, #tpu.memory_space<vmem>>, vector<1x64x8xf32>
    %1 = vector.shape_cast %0 : vector<1x64x8xf32> to vector<64x8xf32>
    %c0_2 = arith.constant 0 : index
    %c0_3 = arith.constant 0 : index
    %2 = vector.load %arg3[%c0_2, %c0_3] : memref<1x8xf32, #tpu.memory_space<vmem>>, vector<1x8xf32>
    %c0_4 = arith.constant 0 : index
    %c0_5 = arith.constant 0 : index
    %3 = vector.load %arg4[%c0_4, %c0_5] : memref<1x8xf32, #tpu.memory_space<vmem>>, vector<1x8xf32>
    %cst = arith.constant dense<0.000000e+00> : vector<64xf32>
    %4 = vector.multi_reduction <add>, %1, %cst [1] : vector<64x8xf32> to vector<64xf32>
    %5 = vector.shape_cast %4 : vector<64xf32> to vector<64x1xf32>
    %cst_6 = arith.constant 8.000000e+00 : f32
    %6 = vector.broadcast %cst_6 : f32 to vector<64x1xf32>
    %7 = arith.divf %5, %6 : vector<64x1xf32>
    %8 = vector.broadcast %7 : vector<64x1xf32> to vector<64x8xf32>
    %9 = arith.subf %1, %8 : vector<64x8xf32>
    %10 = arith.mulf %9, %9 : vector<64x8xf32>
    %cst_7 = arith.constant dense<0.000000e+00> : vector<64xf32>
    %11 = vector.multi_reduction <add>, %10, %cst_7 [1] : vector<64x8xf32> to vector<64xf32>
    %12 = vector.shape_cast %11 : vector<64xf32> to vector<64x1xf32>
    %cst_8 = arith.constant 8.000000e+00 : f32
    %13 = vector.broadcast %cst_8 : f32 to vector<64x1xf32>
    %14 = arith.divf %12, %13 : vector<64x1xf32>
    %15 = vector.broadcast %7 : vector<64x1xf32> to vector<64x8xf32>
    %16 = arith.subf %1, %15 : vector<64x8xf32>
    %cst_9 = arith.constant 9.99999974E-6 : f32
    %17 = vector.broadcast %cst_9 : f32 to vector<64x1xf32>
    %18 = arith.addf %14, %17 : vector<64x1xf32>
    %19 = math.rsqrt %18 : vector<64x1xf32>
    %20 = vector.broadcast %19 : vector<64x1xf32> to vector<64x8xf32>
    %21 = arith.mulf %16, %20 : vector<64x8xf32>
    %22 = vector.broadcast %2 : vector<1x8xf32> to vector<64x8xf32>
    %23 = arith.mulf %21, %22 : vector<64x8xf32>
    %24 = vector.broadcast %3 : vector<1x8xf32> to vector<64x8xf32>
    %25 = arith.addf %23, %24 : vector<64x8xf32>
    %26 = arith.truncf %25 : vector<64x8xf32> to vector<64x8xbf16>
    %c0_10 = arith.constant 0 : index
    %c0_11 = arith.constant 0 : index
    %c0_12 = arith.constant 0 : index
    %27 = vector.load %arg5[%c0_10, %c0_11, %c0_12] : memref<4x8x4xbf16, #tpu.memory_space<vmem>>, vector<1x8x4xbf16>
    %28 = vector.shape_cast %27 : vector<1x8x4xbf16> to vector<8x4xbf16>
    %cst_13 = arith.constant dense<0.000000e+00> : vector<64x4xf32>
    %29 = tpu.matmul %26, %28, %cst_13 {dimension_numbers = #tpu.dot_dimension_numbers<[1], [0], [0], [1], [0, 0, 1, 1], [], []>} : vector<64x8xbf16>, vector<8x4xbf16>, vector<64x4xf32> -> vector<64x4xf32>
    %30 = arith.mulf %29, %29 : vector<64x4xf32>
    %cst_14 = arith.constant dense<0.000000e+00> : vector<64xf32>
    %31 = vector.multi_reduction <add>, %30, %cst_14 [1] : vector<64x4xf32> to vector<64xf32>
    %32 = vector.shape_cast %31 : vector<64xf32> to vector<64x1xf32>
    %cst_15 = arith.constant 1.000000e-24 : f32
    %33 = vector.broadcast %cst_15 : f32 to vector<64x1xf32>
    %34 = arith.maximumf %32, %33 : vector<64x1xf32>
    %35 = math.rsqrt %34 : vector<64x1xf32>
    %36 = vector.broadcast %35 : vector<64x1xf32> to vector<64x4xf32>
    %37 = arith.mulf %29, %36 : vector<64x4xf32>
    %cst_16 = arith.constant 5.000000e-01 : f32
    %38 = vector.broadcast %cst_16 : f32 to vector<64x4xf32>
    %39 = arith.mulf %37, %38 : vector<64x4xf32>
    %40 = arith.truncf %39 : vector<64x4xf32> to vector<64x4xbf16>
    %c0_17 = arith.constant 0 : index
    %c0_18 = arith.constant 0 : index
    %c0_19 = arith.constant 0 : index
    %c0_20 = arith.constant 0 : index
    %41 = vector.load %arg6[%c0_17, %c0_18, %c0_19, %c0_20] : memref<1x4x64x4xbf16, #tpu.memory_space<vmem>>, vector<1x1x64x4xbf16>
    %42 = vector.shape_cast %41 : vector<1x1x64x4xbf16> to vector<64x4xbf16>
    %43 = vector.shape_cast %40 : vector<64x4xbf16> to vector<1x1x64x4xbf16>
    tpu.vector_store %arg6[%c0_17, %c0_18, %c0_19, %c0_20], %43 {strides = array<i32>} : memref<1x4x64x4xbf16, #tpu.memory_space<vmem>>, vector<1x1x64x4xbf16>,
    %c1 = arith.constant 1 : index
    %c0_21 = arith.constant 0 : index
    %c0_22 = arith.constant 0 : index
    %44 = vector.load %arg5[%c1, %c0_21, %c0_22] : memref<4x8x4xbf16, #tpu.memory_space<vmem>>, vector<1x8x4xbf16>
    %45 = vector.shape_cast %44 : vector<1x8x4xbf16> to vector<8x4xbf16>
    %cst_23 = arith.constant dense<0.000000e+00> : vector<64x4xf32>
    %46 = tpu.matmul %26, %45, %cst_23 {dimension_numbers = #tpu.dot_dimension_numbers<[1], [0], [0], [1], [0, 0, 1, 1], [], []>} : vector<64x8xbf16>, vector<8x4xbf16>, vector<64x4xf32> -> vector<64x4xf32>
    %47 = arith.mulf %46, %46 : vector<64x4xf32>
    %cst_24 = arith.constant dense<0.000000e+00> : vector<64xf32>
    %48 = vector.multi_reduction <add>, %47, %cst_24 [1] : vector<64x4xf32> to vector<64xf32>
    %49 = vector.shape_cast %48 : vector<64xf32> to vector<64x1xf32>
    %cst_25 = arith.constant 1.000000e-24 : f32
    %50 = vector.broadcast %cst_25 : f32 to vector<64x1xf32>
    %51 = arith.maximumf %49, %50 : vector<64x1xf32>
    %52 = math.rsqrt %51 : vector<64x1xf32>
    %53 = vector.broadcast %52 : vector<64x1xf32> to vector<64x4xf32>
    %54 = arith.mulf %46, %53 : vector<64x4xf32>
    %cst_26 = arith.constant 5.000000e-01 : f32
    %55 = vector.broadcast %cst_26 : f32 to vector<64x4xf32>
    %56 = arith.mulf %54, %55 : vector<64x4xf32>
    %57 = arith.truncf %56 : vector<64x4xf32> to vector<64x4xbf16>
    %c0_27 = arith.constant 0 : index
    %c1_28 = arith.constant 1 : index
    %c0_29 = arith.constant 0 : index
    %c0_30 = arith.constant 0 : index
    %58 = vector.load %arg6[%c0_27, %c1_28, %c0_29, %c0_30] : memref<1x4x64x4xbf16, #tpu.memory_space<vmem>>, vector<1x1x64x4xbf16>
    %59 = vector.shape_cast %58 : vector<1x1x64x4xbf16> to vector<64x4xbf16>
    %60 = vector.shape_cast %57 : vector<64x4xbf16> to vector<1x1x64x4xbf16>
    tpu.vector_store %arg6[%c0_27, %c1_28, %c0_29, %c0_30], %60 {strides = array<i32>} : memref<1x4x64x4xbf16, #tpu.memory_space<vmem>>, vector<1x1x64x4xbf16>,
    %c2 = arith.constant 2 : index
    %c0_31 = arith.constant 0 : index
    %c0_32 = arith.constant 0 : index
    %61 = vector.load %arg5[%c2, %c0_31, %c0_32] : memref<4x8x4xbf16, #tpu.memory_space<vmem>>, vector<1x8x4xbf16>
    %62 = vector.shape_cast %61 : vector<1x8x4xbf16> to vector<8x4xbf16>
    %cst_33 = arith.constant dense<0.000000e+00> : vector<64x4xf32>
    %63 = tpu.matmul %26, %62, %cst_33 {dimension_numbers = #tpu.dot_dimension_numbers<[1], [0], [0], [1], [0, 0, 1, 1], [], []>} : vector<64x8xbf16>, vector<8x4xbf16>, vector<64x4xf32> -> vector<64x4xf32>
    %64 = arith.mulf %63, %63 : vector<64x4xf32>
    %cst_34 = arith.constant dense<0.000000e+00> : vector<64xf32>
    %65 = vector.multi_reduction <add>, %64, %cst_34 [1] : vector<64x4xf32> to vector<64xf32>
    %66 = vector.shape_cast %65 : vector<64xf32> to vector<64x1xf32>
    %cst_35 = arith.constant 1.000000e-24 : f32
    %67 = vector.broadcast %cst_35 : f32 to vector<64x1xf32>
    %68 = arith.maximumf %66, %67 : vector<64x1xf32>
    %69 = math.rsqrt %68 : vector<64x1xf32>
    %70 = vector.broadcast %69 : vector<64x1xf32> to vector<64x4xf32>
    %71 = arith.mulf %63, %70 : vector<64x4xf32>
    %cst_36 = arith.constant 5.000000e-01 : f32
    %72 = vector.broadcast %cst_36 : f32 to vector<64x4xf32>
    %73 = arith.mulf %71, %72 : vector<64x4xf32>
    %74 = arith.truncf %73 : vector<64x4xf32> to vector<64x4xbf16>
    %c0_37 = arith.constant 0 : index
    %c2_38 = arith.constant 2 : index
    %c0_39 = arith.constant 0 : index
    %c0_40 = arith.constant 0 : index
    %75 = vector.load %arg6[%c0_37, %c2_38, %c0_39, %c0_40] : memref<1x4x64x4xbf16, #tpu.memory_space<vmem>>, vector<1x1x64x4xbf16>
    %76 = vector.shape_cast %75 : vector<1x1x64x4xbf16> to vector<64x4xbf16>
    %77 = vector.shape_cast %74 : vector<64x4xbf16> to vector<1x1x64x4xbf16>
    tpu.vector_store %arg6[%c0_37, %c2_38, %c0_39, %c0_40], %77 {strides = array<i32>} : memref<1x4x64x4xbf16, #tpu.memory_space<vmem>>, vector<1x1x64x4xbf16>,
    %c3 = arith.constant 3 : index
    %c0_41 = arith.constant 0 : index
    %c0_42 = arith.constant 0 : index
    %78 = vector.load %arg5[%c3, %c0_41, %c0_42] : memref<4x8x4xbf16, #tpu.memory_space<vmem>>, vector<1x8x4xbf16>
    %79 = vector.shape_cast %78 : vector<1x8x4xbf16> to vector<8x4xbf16>
    %cst_43 = arith.constant dense<0.000000e+00> : vector<64x4xf32>
    %80 = tpu.matmul %26, %79, %cst_43 {dimension_numbers = #tpu.dot_dimension_numbers<[1], [0], [0], [1], [0, 0, 1, 1], [], []>} : vector<64x8xbf16>, vector<8x4xbf16>, vector<64x4xf32> -> vector<64x4xf32>
    %81 = arith.mulf %80, %80 : vector<64x4xf32>
    %cst_44 = arith.constant dense<0.000000e+00> : vector<64xf32>
    %82 = vector.multi_reduction <add>, %81, %cst_44 [1] : vector<64x4xf32> to vector<64xf32>
    %83 = vector.shape_cast %82 : vector<64xf32> to vector<64x1xf32>
    %cst_45 = arith.constant 1.000000e-24 : f32
    %84 = vector.broadcast %cst_45 : f32 to vector<64x1xf32>
    %85 = arith.maximumf %83, %84 : vector<64x1xf32>
    %86 = math.rsqrt %85 : vector<64x1xf32>
    %87 = vector.broadcast %86 : vector<64x1xf32> to vector<64x4xf32>
    %88 = arith.mulf %80, %87 : vector<64x4xf32>
    %cst_46 = arith.constant 5.000000e-01 : f32
    %89 = vector.broadcast %cst_46 : f32 to vector<64x4xf32>
    %90 = arith.mulf %88, %89 : vector<64x4xf32>
    %91 = arith.truncf %90 : vector<64x4xf32> to vector<64x4xbf16>
    %c0_47 = arith.constant 0 : index
    %c3_48 = arith.constant 3 : index
    %c0_49 = arith.constant 0 : index
    %c0_50 = arith.constant 0 : index
    %92 = vector.load %arg6[%c0_47, %c3_48, %c0_49, %c0_50] : memref<1x4x64x4xbf16, #tpu.memory_space<vmem>>, vector<1x1x64x4xbf16>
    %93 = vector.shape_cast %92 : vector<1x1x64x4xbf16> to vector<64x4xbf16>
    %94 = vector.shape_cast %91 : vector<64x4xbf16> to vector<1x1x64x4xbf16>
    tpu.vector_store %arg6[%c0_47, %c3_48, %c0_49, %c0_50], %94 {strides = array<i32>} : memref<1x4x64x4xbf16, #tpu.memory_space<vmem>>, vector<1x1x64x4xbf16>,
    return
  }
  func.func @transform_0(%arg0: i32, %arg1: i32) -> (i32, i32, i32) {
    %c0_i32 = arith.constant 0 : i32
    %c0_i32_0 = arith.constant 0 : i32
    return %arg0, %arg1, %c0_i32 : i32, i32, i32
  }
  func.func @transform_1(%arg0: i32, %arg1: i32) -> (i32, i32) {
    %c0_i32 = arith.constant 0 : i32
    %c0_i32_0 = arith.constant 0 : i32
    %c0_i32_1 = arith.constant 0 : i32
    return %c0_i32, %c0_i32_0 : i32, i32
  }
  func.func @transform_2(%arg0: i32, %arg1: i32) -> (i32, i32) {
    %c0_i32 = arith.constant 0 : i32
    %c0_i32_0 = arith.constant 0 : i32
    %c0_i32_1 = arith.constant 0 : i32
    return %c0_i32, %c0_i32_0 : i32, i32
  }
  func.func @transform_3(%arg0: i32, %arg1: i32) -> (i32, i32, i32) {
    %c0_i32 = arith.constant 0 : i32
    %c0_i32_0 = arith.constant 0 : i32
    %c0_i32_1 = arith.constant 0 : i32
    %c0_i32_2 = arith.constant 0 : i32
    return %c0_i32, %c0_i32_0, %c0_i32_1 : i32, i32, i32
  }
  func.func @transform_4(%arg0: i32, %arg1: i32) -> (i32, i32, i32, i32) {
    %c0_i32 = arith.constant 0 : i32
    %c0_i32_0 = arith.constant 0 : i32
    %c0_i32_1 = arith.constant 0 : i32
    return %arg0, %c0_i32, %arg1, %c0_i32_0 : i32, i32, i32, i32
  }
}

</mosaic_0001>

<llo_original>
// kernel: tpu_custom_call.1
$region0: #{tpu_custom_call.1}
  #allocation0 [shape = 'u32[]', space=smem, size = 0x4, offset = 0x4, fixed_abs, tag = 'smem constant byte address 0x4 - core index']
  #allocation1 [shape = 'u32[144,128]{1,0:T(1,128)}', space=vmem, size = 0x12000, scoped, tag = 'internal scratch']
  %s0 = inlined_call_operand.vmem [shape: f32[2,64,8], index: 0, kind: input, shape index: {}]
  %s1 = inlined_call_operand.vmem [shape: f32[1,8], index: 1, kind: input, shape index: {}]
  %s2 = inlined_call_operand.vmem [shape: f32[1,8], index: 2, kind: input, shape index: {}]
  %s3 = inlined_call_operand.vmem [shape: bf16[4,8,4], index: 3, kind: input, shape index: {}]
  %s4 = inlined_call_operand.vmem [shape: bf16[2,4,64,4], index: 4, kind: output, shape index: {}]
  %s5 = sld [smem:[#allocation0]]
  $region49: #{tpu_custom_call.1} parent=0
    _
  %s7 = ssub.s32 1, %s5
  %s8 = scalar_select 0, %s7, %s5
  loop: start=0, step=1, limit=4
  $region2: #{tpu_custom_call.1} parent=0 // loop_pre_header
    _
  $region3: #{tpu_custom_call.1} parent=0 // loop_header
    %s10 = sphi 0, %s14
    %p11 = scmp.ge.s32.totalorder %s10, 4
    %s17 = sphi 0, %s29
    %s18 = sphi 0, %s25
    %s19 = sphi 0, %s17
    %s20 = sphi 0, %s18
    %s21 = sphi 0, %s19
    %s22 = sphi 0, %s20
    %s34 = sphi 0, %s36
    %s37 = sphi 0, %s34
    %s38 = sphi 0, %s37
    %s54 = sphi 0, %s38
    %s58 = sphi 0, %s58
    %s60 = sphi 0, %s58
    %s61 = sphi 0, %s60
    %s75 = sphi 0, %s61
    %s79 = sphi 0, %s79
    %s81 = sphi 0, %s79
    %s82 = sphi 0, %s81
    %s96 = sphi 0, %s82
    %s100 = sphi 0, %s100
    %s102 = sphi 0, %s100
    %s103 = sphi 0, %s102
    %s117 = sphi 0, %s103
    %s125 = sphi 0, %s127
    %s128 = sphi 0, %s125
    %s129 = sphi 0, %s128
    %s145 = sphi 0, %s129
  $region4: #{tpu_custom_call.1} parent=0 // loop_header_branch
    %13 = sbr.rel (%p11) target = $region8
  $region5: #{tpu_custom_call.1} parent=0 // loop_body
    %s15 = ssub.s32 %s10, 1
    %s16 = ssub.s32 %s10, 2
    %s23 = sadd.s32 1, %s18
    %p24 = scmp.ge.s32.totalorder %s23, 1
    %s25 = scalar_select %p24, 0, %s23
    %s26 = sadd.s32 1, %s17
    %s27 = scalar_select %p24, %s26, %s17
    %p28 = scmp.ge.s32.totalorder %s27, 2
    %s29 = scalar_select %p28, 0, %s27
    %s30 = ssub.s32 %s17, %s29
    %s31 = ssub.s32 %s18, %s25
    %s32 = sor.u32 %s30, %s31
    %p33 = scmp.eq.s32.totalorder %s32, 0
    %s35 = sadd.s32 %s34, 1
    %s36 = scalar_select %p33, %s34, %s35
    %p39 = pneg %p33
    %p40 = scmp.eq.s32.totalorder %s10, 1
    %p41 = por %p39, %p40
    %p42 = scmp.ne.s32.totalorder %s34, %s37
    %p43 = scmp.eq.s32.totalorder %s10, 0
    %p44 = por %p42, %p43
    %p45 = scmp.ne.s32.totalorder %s34, %s37
    %p46 = scmp.eq.s32.totalorder %s15, 1
    %p47 = por %p45, %p46
    %p48 = scmp.ne.s32.totalorder %s37, %s38
    %p49 = scmp.eq.s32.totalorder %s15, 0
    %p50 = por %p48, %p49
    %p51 = scmp.ne.s32.totalorder %s37, %s38
    %p52 = scmp.eq.s32.totalorder %s16, 1
    %p53 = por %p51, %p52
    %p55 = scmp.ne.s32.totalorder %s38, %s54
    %p56 = scmp.eq.s32.totalorder %s16, 0
    %p57 = por %p55, %p56
    %s59 = sadd.s32 %s58, 1
    %p62 = scmp.eq.s32.totalorder %s10, 1
    %p63 = scmp.ne.s32.totalorder %s58, %s60
    %p64 = scmp.eq.s32.totalorder %s10, 0
    %p65 = por %p63, %p64
    %p66 = scmp.ne.s32.totalorder %s58, %s60
    %p67 = scmp.eq.s32.totalorder %s15, 1
    %p68 = por %p66, %p67
    %p69 = scmp.ne.s32.totalorder %s60, %s61
    %p70 = scmp.eq.s32.totalorder %s15, 0
    %p71 = por %p69, %p70
    %p72 = scmp.ne.s32.totalorder %s60, %s61
    %p73 = scmp.eq.s32.totalorder %s16, 1
    %p74 = por %p72, %p73
    %p76 = scmp.ne.s32.totalorder %s61, %s75
    %p77 = scmp.eq.s32.totalorder %s16, 0
    %p78 = por %p76, %p77
    %s80 = sadd.s32 %s79, 1
    %p83 = scmp.eq.s32.totalorder %s10, 1
    %p84 = scmp.ne.s32.totalorder %s79, %s81
    %p85 = scmp.eq.s32.totalorder %s10, 0
    %p86 = por %p84, %p85
    %p87 = scmp.ne.s32.totalorder %s79, %s81
    %p88 = scmp.eq.s32.totalorder %s15, 1
    %p89 = por %p87, %p88
    %p90 = scmp.ne.s32.totalorder %s81, %s82
    %p91 = scmp.eq.s32.totalorder %s15, 0
    %p92 = por %p90, %p91
    %p93 = scmp.ne.s32.totalorder %s81, %s82
    %p94 = scmp.eq.s32.totalorder %s16, 1
    %p95 = por %p93, %p94
    %p97 = scmp.ne.s32.totalorder %s82, %s96
    %p98 = scmp.eq.s32.totalorder %s16, 0
    %p99 = por %p97, %p98
    %s101 = sadd.s32 %s100, 1
    %p104 = scmp.eq.s32.totalorder %s10, 1
    %p105 = scmp.ne.s32.totalorder %s100, %s102
    %p106 = scmp.eq.s32.totalorder %s10, 0
    %p107 = por %p105, %p106
    %p108 = scmp.ne.s32.totalorder %s100, %s102
    %p109 = scmp.eq.s32.totalorder %s15, 1
    %p110 = por %p108, %p109
    %p111 = scmp.ne.s32.totalorder %s102, %s103
    %p112 = scmp.eq.s32.totalorder %s15, 0
    %p113 = por %p111, %p112
    %p114 = scmp.ne.s32.totalorder %s102, %s103
    %p115 = scmp.eq.s32.totalorder %s16, 1
    %p116 = por %p114, %p115
    %p118 = scmp.ne.s32.totalorder %s103, %s117
    %p119 = scmp.eq.s32.totalorder %s16, 0
    %p120 = por %p118, %p119
    %s121 = ssub.s32 %s17, %s29
    %s122 = ssub.s32 %s18, %s25
    %s123 = sor.u32 %s121, %s122
    %p124 = scmp.eq.s32.totalorder %s123, 0
    %s126 = sadd.s32 %s125, 1
    %s127 = scalar_select %p124, %s125, %s126
    %p130 = pneg %p124
    %p131 = scmp.eq.s32.totalorder %s10, 1
    %p132 = por %p130, %p131
    %p133 = scmp.ne.s32.totalorder %s125, %s128
    %p134 = scmp.eq.s32.totalorder %s10, 0
    %p135 = por %p133, %p134
    %p136 = scmp.ne.s32.totalorder %s125, %s128
    %p137 = scmp.eq.s32.totalorder %s15, 1
    %p138 = por %p136, %p137
    %p139 = scmp.ne.s32.totalorder %s128, %s129
    %p140 = scmp.eq.s32.totalorder %s15, 0
    %p141 = por %p139, %p140
    %p142 = scmp.ne.s32.totalorder %s128, %s129
    %p143 = scmp.eq.s32.totalorder %s16, 1
    %p144 = por %p142, %p143
    %p146 = scmp.ne.s32.totalorder %s129, %s145
    %p147 = scmp.eq.s32.totalorder %s16, 0
    %p148 = por %p146, %p147
    %p149 = scmp.le.s32.totalorder 1, %s10
    %p150 = scmp.lt.s32.totalorder %s10, 3
    %p151 = pnand %p149, %p150
    %p152 = pneg %p151
    // Predicated region
    $region9: #{tpu_custom_call.1} parent=5 // pred_check
      _
    $region10: #{tpu_custom_call.1} parent=5 // pred_check_branch
      %154 = sbr.rel (%p151) target = $region12
    $region11: #{tpu_custom_call.1} parent=5 // pred_region
      %s155 = ssub.s32 %s10, 1
      // Predicated region
      $region13: #{tpu_custom_call.1} parent=11 // pred_check
        %p156 = pneg %p71
      $region14: #{tpu_custom_call.1} parent=11 // pred_check_branch
        %158 = sbr.rel (%p156) target = $region16
      $region15: #{tpu_custom_call.1} parent=11 // pred_region
        _
      $region16: #{tpu_custom_call.1} parent=11 // pred_fallthru
        _
      // Predicated region
      $region17: #{tpu_custom_call.1} parent=11 // pred_check
        %p159 = pneg %p92
      $region18: #{tpu_custom_call.1} parent=11 // pred_check_branch
        %161 = sbr.rel (%p159) target = $region20
      $region19: #{tpu_custom_call.1} parent=11 // pred_region
        _
      $region20: #{tpu_custom_call.1} parent=11 // pred_fallthru
        _
      // Predicated region
      $region21: #{tpu_custom_call.1} parent=11 // pred_check
        %p162 = pneg %p113
      $region22: #{tpu_custom_call.1} parent=11 // pred_check_branch
        %164 = sbr.rel (%p162) target = $region24
      $region23: #{tpu_custom_call.1} parent=11 // pred_region
        _
      $region24: #{tpu_custom_call.1} parent=11 // pred_fallthru
        _
    $region12: #{tpu_custom_call.1} parent=5 // pred_fallthru
      _
    %p165 = scmp.lt.s32.totalorder %s10, 2
    // Predicated region
    $region25: #{tpu_custom_call.1} parent=5 // pred_check
      %p166 = pneg %p165
    $region26: #{tpu_custom_call.1} parent=5 // pred_check_branch
      %168 = sbr.rel (%p166) target = $region28
    $region27: #{tpu_custom_call.1} parent=5 // pred_region
      // Predicated region
      $region29: #{tpu_custom_call.1} parent=27 // pred_check
        %p169 = pneg %p44
      $region30: #{tpu_custom_call.1} parent=27 // pred_check_branch
        %171 = sbr.rel (%p169) target = $region32
      $region31: #{tpu_custom_call.1} parent=27 // pred_region
        %s172 = smul.u32 8, %s18
        %p173 = scmp.lt.s32.totalorder %s17, 1
        %s174 = scalar_select %p173, %s17, 1
        %p175 = scmp.lt.s32.totalorder %s172, 7
        %s176 = scalar_select %p175, %s172, 7
        %s177 = smul.addr %s174, 8
        %s178 = sadd.s32 %s176, %s177
        %s179 = smul.addr %s178, 8
        %s180 = scalar_lea.vmem %s0, %s179
        %s181 = smul.u32 8, %s18
      $region32: #{tpu_custom_call.1} parent=27 // pred_fallthru
        _
    $region28: #{tpu_custom_call.1} parent=5 // pred_fallthru
      _
    %p182 = scmp.le.s32.totalorder 1, %s10
    %p183 = scmp.lt.s32.totalorder %s10, 3
    %p184 = pnand %p182, %p183
    %p185 = pneg %p184
    // Predicated region
    $region33: #{tpu_custom_call.1} parent=5 // pred_check
      _
    $region34: #{tpu_custom_call.1} parent=5 // pred_check_branch
      %187 = sbr.rel (%p184) target = $region36
    $region35: #{tpu_custom_call.1} parent=5 // pred_region
      %s188 = ssub.s32 %s10, 1
      %s189 = smul.u32 8, %s20
      %p190 = scmp.lt.s32.totalorder %s19, 1
      %s191 = scalar_select %p190, %s19, 1
      %p192 = scmp.lt.s32.totalorder %s189, 7
      %s193 = scalar_select %p192, %s189, 7
      %s194 = smul.addr %s191, 8
      %s195 = sadd.s32 %s193, %s194
      %s196 = smul.addr %s195, 8
      %s197 = scalar_lea.vmem %s0, %s196
      %p198 = pneg %p50
      %p199 = pneg %p47
      %p200 = pneg %p71
      %p201 = pneg %p68
      %p202 = pneg %p92
      %p203 = pneg %p89
      %p204 = pneg %p113
      %p205 = pneg %p110
      %p206 = pneg %p141
      %p207 = pneg %p138
      %s208 = smul.u32 8, %s20
      %p209 = scmp.lt.s32.totalorder %s19, 1
      %s210 = scalar_select %p209, %s19, 1
      %p211 = scmp.lt.s32.totalorder %s208, 7
      %s212 = scalar_select %p211, %s208, 7
      %s213 = smul.addr %s210, 32
      %s214 = sadd.s32 %s212, %s213
      %s215 = smul.addr %s214, 4
      %s216 = scalar_lea.vmem %s4, %s215
      %s217 = smul.u32 8, %s20
      %p218 = scmp.lt.s32.totalorder %s19, 1
      %s219 = scalar_select %p218, %s19, 1
      %p220 = scmp.lt.s32.totalorder %s217, 7
      %s221 = scalar_select %p220, %s217, 7
      %s222 = smul.addr %s219, 8
      %s223 = sadd.s32 %s221, %s222
      %s224 = smul.addr %s223, 8
      %s225 = scalar_lea.vmem %s0, %s224
      %s226 = smul.u32 8, %s20
      %s227 = smul.u32 8, %s20
      %p228 = scmp.lt.s32.totalorder %s19, 1
      %s229 = scalar_select %p228, %s19, 1
      %p230 = scmp.lt.s32.totalorder %s227, 7
      %s231 = scalar_select %p230, %s227, 7
      %s232 = smul.addr %s229, 32
      %s233 = sadd.s32 %s231, %s232
      %s234 = smul.addr %s233, 4
      %s235 = scalar_lea.vmem %s4, %s234
      %s236 = smul.u32 8, %s20
      %v238 = vld [vmem:[%s225] sm:$0xff]
      %v239 = vld [vmem:[%s225 + $0x8] sm:$0xff]
      %v240 = vld [vmem:[%s225 + $0x10] sm:$0xff]
      %v241 = vld [vmem:[%s225 + $0x18] sm:$0xff]
      %v242 = vld [vmem:[%s225 + $0x20] sm:$0xff]
      %v243 = vld [vmem:[%s225 + $0x28] sm:$0xff]
      %v244 = vld [vmem:[%s225 + $0x30] sm:$0xff]
      %v245 = vld [vmem:[%s225 + $0x38] sm:$0xff]
      %v246 = vld [vmem:[%s1] sm:$0x1]
      %v247 = vld [vmem:[%s2] sm:$0x1]
      %vm248 = vcmask 64512
      %v249 = vsel %vm248, %v238, 0.0
      %250 = vadd.xlane.f32.xlu0 %v249
      %v251 = vpop.xlane.xlu0 %250
      %v252 = vsel %vm248, %v239, 0.0
      %253 = vadd.xlane.f32.xlu0 %v252
      %v254 = vpop.xlane.xlu0 %253
      %v255 = vsel %vm248, %v240, 0.0
      %256 = vadd.xlane.f32.xlu0 %v255
      %v257 = vpop.xlane.xlu0 %256
      %v258 = vsel %vm248, %v241, 0.0
      %259 = vadd.xlane.f32.xlu0 %v258
      %v260 = vpop.xlane.xlu0 %259
      %v261 = vsel %vm248, %v242, 0.0
      %262 = vadd.xlane.f32.xlu0 %v261
      %v263 = vpop.xlane.xlu0 %262
      %v264 = vsel %vm248, %v243, 0.0
      %265 = vadd.xlane.f32.xlu0 %v264
      %v266 = vpop.xlane.xlu0 %265
      %v267 = vsel %vm248, %v244, 0.0
      %268 = vadd.xlane.f32.xlu0 %v267
      %v269 = vpop.xlane.xlu0 %268
      %v270 = vsel %vm248, %v245, 0.0
      %271 = vadd.xlane.f32.xlu0 %v270
      %v272 = vpop.xlane.xlu0 %271
      %v273 = vrcp.pop 8.0
      %v274 = vmul.f32 %v251, %v273
      %v275 = vmul.f32 %v254, %v273
      %v276 = vmul.f32 %v257, %v273
      %v277 = vmul.f32 %v260, %v273
      %v278 = vmul.f32 %v263, %v273
      %v279 = vmul.f32 %v266, %v273
      %v280 = vmul.f32 %v269, %v273
      %v281 = vmul.f32 %v272, %v273
      %v282 = vsub.f32 %v238, %v274
      %v283 = vsub.f32 %v239, %v275
      %v284 = vsub.f32 %v240, %v276
      %v285 = vsub.f32 %v241, %v277
      %v286 = vsub.f32 %v242, %v278
      %v287 = vsub.f32 %v243, %v279
      %v288 = vsub.f32 %v244, %v280
      %v289 = vsub.f32 %v245, %v281
      %v290 = vmul.f32 %v282, %v282
      %v291 = vmul.f32 %v283, %v283
      %v292 = vmul.f32 %v284, %v284
      %v293 = vmul.f32 %v285, %v285
      %v294 = vmul.f32 %v286, %v286
      %v295 = vmul.f32 %v287, %v287
      %v296 = vmul.f32 %v288, %v288
      %v297 = vmul.f32 %v289, %v289
      %v298 = vsel %vm248, %v290, 0.0
      %299 = vadd.xlane.f32.xlu0 %v298
      %v300 = vpop.xlane.xlu0 %299
      %v301 = vsel %vm248, %v291, 0.0
      %302 = vadd.xlane.f32.xlu0 %v301
      %v303 = vpop.xlane.xlu0 %302
      %v304 = vsel %vm248, %v292, 0.0
      %305 = vadd.xlane.f32.xlu0 %v304
      %v306 = vpop.xlane.xlu0 %305
      %v307 = vsel %vm248, %v293, 0.0
      %308 = vadd.xlane.f32.xlu0 %v307
      %v309 = vpop.xlane.xlu0 %308
      %v310 = vsel %vm248, %v294, 0.0
      %311 = vadd.xlane.f32.xlu0 %v310
      %v312 = vpop.xlane.xlu0 %311
      %v313 = vsel %vm248, %v295, 0.0
      %314 = vadd.xlane.f32.xlu0 %v313
      %v315 = vpop.xlane.xlu0 %314
      %v316 = vsel %vm248, %v296, 0.0
      %317 = vadd.xlane.f32.xlu0 %v316
      %v318 = vpop.xlane.xlu0 %317
      %v319 = vsel %vm248, %v297, 0.0
      %320 = vadd.xlane.f32.xlu0 %v319
      %v321 = vpop.xlane.xlu0 %320
      %v322 = vmul.f32 %v300, %v273
      %v323 = vmul.f32 %v303, %v273
      %v324 = vmul.f32 %v306, %v273
      %v325 = vmul.f32 %v309, %v273
      %v326 = vmul.f32 %v312, %v273
      %v327 = vmul.f32 %v315, %v273
      %v328 = vmul.f32 %v318, %v273
      %v329 = vmul.f32 %v321, %v273
      %v330 = vadd.f32 %v322, 1e-05
      %v331 = vadd.f32 %v323, 1e-05
      %v332 = vadd.f32 %v324, 1e-05
      %v333 = vadd.f32 %v325, 1e-05
      %v334 = vadd.f32 %v326, 1e-05
      %v335 = vadd.f32 %v327, 1e-05
      %v336 = vadd.f32 %v328, 1e-05
      %v337 = vadd.f32 %v329, 1e-05
      %v338 = vrsqrt.pop %v330
      %v339 = vrsqrt.pop %v331
      %v340 = vrsqrt.pop %v332
      %v341 = vrsqrt.pop %v333
      %v342 = vrsqrt.pop %v334
      %v343 = vrsqrt.pop %v335
      %v344 = vrsqrt.pop %v336
      %v345 = vrsqrt.pop %v337
      %v346 = vmul.f32 %v282, %v338
      %v347 = vmul.f32 %v283, %v339
      %v348 = vmul.f32 %v284, %v340
      %v349 = vmul.f32 %v285, %v341
      %v350 = vmul.f32 %v286, %v342
      %v351 = vmul.f32 %v287, %v343
      %v352 = vmul.f32 %v288, %v344
      %v353 = vmul.f32 %v289, %v345
      %v355 = vlaneseq
      %v356 = vshrl.u32 %v355, 7
      %v357 = vsub.s32 0, %v356
      %v358 = vrot.slane %v246, %v357
      %v360 = vmul.f32 %v346, %v358
      %v361 = vmul.f32 %v347, %v358
      %v362 = vmul.f32 %v348, %v358
      %v363 = vmul.f32 %v349, %v358
      %v364 = vmul.f32 %v350, %v358
      %v365 = vmul.f32 %v351, %v358
      %v366 = vmul.f32 %v352, %v358
      %v367 = vmul.f32 %v353, %v358
      %v369 = vlaneseq
      %v370 = vshrl.u32 %v369, 7
      %v371 = vsub.s32 0, %v370
      %v372 = vrot.slane %v247, %v371
      %v374 = vadd.f32 %v360, %v372
      %v375 = vadd.f32 %v361, %v372
      %v376 = vadd.f32 %v362, %v372
      %v377 = vadd.f32 %v363, %v372
      %v378 = vadd.f32 %v364, %v372
      %v379 = vadd.f32 %v365, %v372
      %v380 = vadd.f32 %v366, %v372
      %v381 = vadd.f32 %v367, %v372
      %v382 = vpack.c.bf16 %v375, %v374
      %v383 = vpack.c.bf16 %v377, %v376
      %v384 = vpack.c.bf16 %v379, %v378
      %v385 = vpack.c.bf16 %v381, %v380
      %v386 = vld [vmem:[%s3] sm:$0xf]
      %v388 = vsel %vm248, %v382, 0
      %v391 = vsel %vm248, %v383, 0
      %v394 = vsel %vm248, %v384, 0
      %v397 = vsel %vm248, %v385, 0
      %vm399 = vcmask 1043456
      %v401 = vsel %vm399, %v386, 0
      %403 = vmatprep.subr.bf16.mxu0 0
      %404 = vmatpush1.bf16.msra.mxu0 %v401
      %405 = vmatprep.subr.bf16.mxu0 0
      %406 = vmatpush1.bf16.msra.mxu0 0
      %407 = vmatprep.subr.bf16.mxu0 0
      %408 = vmatpush1.bf16.msra.mxu0 0
      %409 = vmatprep.subr.bf16.mxu0 0
      %410 = vmatpush1.bf16.msra.mxu0 0
      %411 = vmatprep.subr.bf16.mxu0 0
      %412 = vmatpush1.bf16.msra.mxu0 0
      %413 = vmatprep.subr.bf16.mxu0 0
      %414 = vmatpush1.bf16.msra.mxu0 0
      %415 = vmatprep.subr.bf16.mxu0 0
      %416 = vmatpush1.bf16.msra.mxu0 0
      %417 = vmatprep.subr.bf16.mxu0 0
      %418 = vmatpush1.bf16.msra.mxu0 0
      %419 = vmatprep.subr.bf16.mxu0 0
      %420 = vmatpush1.bf16.msra.mxu0 0
      %421 = vmatprep.subr.bf16.mxu0 0
      %422 = vmatpush1.bf16.msra.mxu0 0
      %423 = vmatprep.subr.bf16.mxu0 0
      %424 = vmatpush1.bf16.msra.mxu0 0
      %425 = vmatprep.subr.bf16.mxu0 0
      %426 = vmatpush1.bf16.msra.mxu0 0
      %427 = vmatprep.subr.bf16.mxu0 0
      %428 = vmatpush1.bf16.msra.mxu0 0
      %429 = vmatprep.subr.bf16.mxu0 0
      %430 = vmatpush1.bf16.msra.mxu0 0
      %431 = vmatprep.subr.bf16.mxu0 0
      %432 = vmatpush1.bf16.msra.mxu0 0
      %433 = vmatprep.subr.bf16.mxu0 0
      %434 = vmatpush1.bf16.msra.mxu0 0
      %435 = vmatprep.mubr.bf16.mxu0 0
      %436 = vmatmul.mubr.bf16.gmra.mrb[0].mxu0 %v388
      %v437 = vpop.f32.mrb[0].mxu0
      %v438 = vadd.f32 0.0, %v437
      %v439 = vpop.f32.mrb[0].mxu0
      %v440 = vpop.f32.mrb[0].mxu0
      %v441 = vadd.f32 0.0, %v440
      %v442 = vpop.f32.mrb[0].mxu0
      %443 = vmatprep.mubr.bf16.mxu0 0
      %444 = vmatmul.mubr.bf16.gmra.mrb[0].mxu0 %v391
      %v445 = vpop.f32.mrb[0].mxu0
      %v446 = vadd.f32 0.0, %v445
      %v447 = vpop.f32.mrb[0].mxu0
      %v448 = vpop.f32.mrb[0].mxu0
      %v449 = vadd.f32 0.0, %v448
      %v450 = vpop.f32.mrb[0].mxu0
      %451 = vmatprep.mubr.bf16.mxu0 0
      %452 = vmatmul.mubr.bf16.gmra.mrb[0].mxu0 %v394
      %v453 = vpop.f32.mrb[0].mxu0
      %v454 = vadd.f32 0.0, %v453
      %v455 = vpop.f32.mrb[0].mxu0
      %v456 = vpop.f32.mrb[0].mxu0
      %v457 = vadd.f32 0.0, %v456
      %v458 = vpop.f32.mrb[0].mxu0
      %459 = vmatprep.mubr.bf16.mxu0 0
      %460 = vmatmul.mubr.bf16.gmra.mrb[0].mxu0 %v397
      %v461 = vpop.f32.mrb[0].mxu0
      %v462 = vadd.f32 0.0, %v461
      %v463 = vpop.f32.mrb[0].mxu0
      %v464 = vpop.f32.mrb[0].mxu0
      %v465 = vadd.f32 0.0, %v464
      %v466 = vpop.f32.mrb[0].mxu0
      %467 = vdwg.mxu0
      %v468 = vmul.f32 %v438, %v438
      %v469 = vmul.f32 %v441, %v441
      %v470 = vmul.f32 %v446, %v446
      %v471 = vmul.f32 %v449, %v449
      %v472 = vmul.f32 %v454, %v454
      %v473 = vmul.f32 %v457, %v457
      %v474 = vmul.f32 %v462, %v462
      %v475 = vmul.f32 %v465, %v465
      %vm476 = vcmask 31744
      %v477 = vsel %vm476, %v468, 0.0
      %478 = vadd.xlane.f32.xlu0 %v477
      %v479 = vpop.xlane.xlu0 %478
      %v480 = vsel %vm476, %v469, 0.0
      %481 = vadd.xlane.f32.xlu0 %v480
      %v482 = vpop.xlane.xlu0 %481
      %v483 = vsel %vm476, %v470, 0.0
      %484 = vadd.xlane.f32.xlu0 %v483
      %v485 = vpop.xlane.xlu0 %484
      %v486 = vsel %vm476, %v471, 0.0
      %487 = vadd.xlane.f32.xlu0 %v486
      %v488 = vpop.xlane.xlu0 %487
      %v489 = vsel %vm476, %v472, 0.0
      %490 = vadd.xlane.f32.xlu0 %v489
      %v491 = vpop.xlane.xlu0 %490
      %v492 = vsel %vm476, %v473, 0.0
      %493 = vadd.xlane.f32.xlu0 %v492
      %v494 = vpop.xlane.xlu0 %493
      %v495 = vsel %vm476, %v474, 0.0
      %496 = vadd.xlane.f32.xlu0 %v495
      %v497 = vpop.xlane.xlu0 %496
      %v498 = vsel %vm476, %v475, 0.0
      %499 = vadd.xlane.f32.xlu0 %v498
      %v500 = vpop.xlane.xlu0 %499
      %v501 = vmax.f32 %v479, 1e-24
      %v502 = vmax.f32 %v482, 1e-24
      %v503 = vmax.f32 %v485, 1e-24
      %v504 = vmax.f32 %v488, 1e-24
      %v505 = vmax.f32 %v491, 1e-24
      %v506 = vmax.f32 %v494, 1e-24
      %v507 = vmax.f32 %v497, 1e-24
      %v508 = vmax.f32 %v500, 1e-24
      %v509 = vrsqrt.pop %v501
      %v510 = vrsqrt.pop %v502
      %v511 = vrsqrt.pop %v503
      %v512 = vrsqrt.pop %v504
      %v513 = vrsqrt.pop %v505
      %v514 = vrsqrt.pop %v506
      %v515 = vrsqrt.pop %v507
      %v516 = vrsqrt.pop %v508
      %v517 = vmul.f32 %v438, %v509
      %v518 = vmul.f32 %v441, %v510
      %v519 = vmul.f32 %v446, %v511
      %v520 = vmul.f32 %v449, %v512
      %v521 = vmul.f32 %v454, %v513
      %v522 = vmul.f32 %v457, %v514
      %v523 = vmul.f32 %v462, %v515
      %v524 = vmul.f32 %v465, %v516
      %v525 = vmul.f32 %v517, 0.5
      %v526 = vmul.f32 %v518, 0.5
      %v527 = vmul.f32 %v519, 0.5
      %v528 = vmul.f32 %v520, 0.5
      %v529 = vmul.f32 %v521, 0.5
      %v530 = vmul.f32 %v522, 0.5
      %v531 = vmul.f32 %v523, 0.5
      %v532 = vmul.f32 %v524, 0.5
      %v533 = vpack.c.bf16 %v526, %v525
      %v534 = vpack.c.bf16 %v528, %v527
      %v535 = vpack.c.bf16 %v530, %v529
      %v536 = vpack.c.bf16 %v532, %v531
      %v541 = vunpack.c.l.b16 %v533
      %v542 = vunpack.c.h.b16 %v533
      %v543 = vunpack.c.l.b16 %v534
      %v544 = vunpack.c.h.b16 %v534
      %v545 = vunpack.c.l.b16 %v535
      %v546 = vunpack.c.h.b16 %v535
      %v547 = vunpack.c.l.b16 %v536
      %v548 = vunpack.c.h.b16 %v536
      %v549 = vpack.c.b16 %v541, %v541
      %v550 = vpack.c.b16 %v542, %v542
      %v551 = vpack.c.b16 %v543, %v543
      %v552 = vpack.c.b16 %v544, %v544
      %v553 = vpack.c.b16 %v545, %v545
      %v554 = vpack.c.b16 %v546, %v546
      %v555 = vpack.c.b16 %v547, %v547
      %v556 = vpack.c.b16 %v548, %v548
      %vm565 = vcmask 27648
      %566 = vst.msk [vmem:[%s235] sm:$0xf] %vm565, %v549
      %567 = vst.msk [vmem:[%s235 + $0x4] sm:$0xf] %vm565, %v550
      %568 = vst.msk [vmem:[%s235 + $0x8] sm:$0xf] %vm565, %v551
      %569 = vst.msk [vmem:[%s235 + $0xc] sm:$0xf] %vm565, %v552
      %570 = vst.msk [vmem:[%s235 + $0x10] sm:$0xf] %vm565, %v553
      %571 = vst.msk [vmem:[%s235 + $0x14] sm:$0xf] %vm565, %v554
      %572 = vst.msk [vmem:[%s235 + $0x18] sm:$0xf] %vm565, %v555
      %573 = vst.msk [vmem:[%s235 + $0x1c] sm:$0xf] %vm565, %v556
      %s574 = scalar_lea.vmem %s3, 4
      %v575 = vld [vmem:[%s574] sm:$0xf]
      %v577 = vsel %vm399, %v575, 0
      %579 = vmatprep.subr.bf16.mxu0 0
      %580 = vmatpush1.bf16.msra.mxu0 %v577
      %581 = vmatprep.subr.bf16.mxu0 0
      %582 = vmatpush1.bf16.msra.mxu0 0
      %583 = vmatprep.subr.bf16.mxu0 0
      %584 = vmatpush1.bf16.msra.mxu0 0
      %585 = vmatprep.subr.bf16.mxu0 0
      %586 = vmatpush1.bf16.msra.mxu0 0
      %587 = vmatprep.subr.bf16.mxu0 0
      %588 = vmatpush1.bf16.msra.mxu0 0
      %589 = vmatprep.subr.bf16.mxu0 0
      %590 = vmatpush1.bf16.msra.mxu0 0
      %591 = vmatprep.subr.bf16.mxu0 0
      %592 = vmatpush1.bf16.msra.mxu0 0
      %593 = vmatprep.subr.bf16.mxu0 0
      %594 = vmatpush1.bf16.msra.mxu0 0
      %595 = vmatprep.subr.bf16.mxu0 0
      %596 = vmatpush1.bf16.msra.mxu0 0
      %597 = vmatprep.subr.bf16.mxu0 0
      %598 = vmatpush1.bf16.msra.mxu0 0
      %599 = vmatprep.subr.bf16.mxu0 0
      %600 = vmatpush1.bf16.msra.mxu0 0
      %601 = vmatprep.subr.bf16.mxu0 0
      %602 = vmatpush1.bf16.msra.mxu0 0
      %603 = vmatprep.subr.bf16.mxu0 0
      %604 = vmatpush1.bf16.msra.mxu0 0
      %605 = vmatprep.subr.bf16.mxu0 0
      %606 = vmatpush1.bf16.msra.mxu0 0
      %607 = vmatprep.subr.bf16.mxu0 0
      %608 = vmatpush1.bf16.msra.mxu0 0
      %609 = vmatprep.subr.bf16.mxu0 0
      %610 = vmatpush1.bf16.msra.mxu0 0
      %611 = vmatprep.mubr.bf16.mxu0 0
      %612 = vmatmul.mubr.bf16.gmra.mrb[0].mxu0 %v388
      %v613 = vpop.f32.mrb[0].mxu0
      %v614 = vadd.f32 0.0, %v613
      %v615 = vpop.f32.mrb[0].mxu0
      %v616 = vpop.f32.mrb[0].mxu0
      %v617 = vadd.f32 0.0, %v616
      %v618 = vpop.f32.mrb[0].mxu0
      %619 = vmatprep.mubr.bf16.mxu0 0
      %620 = vmatmul.mubr.bf16.gmra.mrb[0].mxu0 %v391
      %v621 = vpop.f32.mrb[0].mxu0
      %v622 = vadd.f32 0.0, %v621
      %v623 = vpop.f32.mrb[0].mxu0
      %v624 = vpop.f32.mrb[0].mxu0
      %v625 = vadd.f32 0.0, %v624
      %v626 = vpop.f32.mrb[0].mxu0
      %627 = vmatprep.mubr.bf16.mxu0 0
      %628 = vmatmul.mubr.bf16.gmra.mrb[0].mxu0 %v394
      %v629 = vpop.f32.mrb[0].mxu0
      %v630 = vadd.f32 0.0, %v629
      %v631 = vpop.f32.mrb[0].mxu0
      %v632 = vpop.f32.mrb[0].mxu0
      %v633 = vadd.f32 0.0, %v632
      %v634 = vpop.f32.mrb[0].mxu0
      %635 = vmatprep.mubr.bf16.mxu0 0
      %636 = vmatmul.mubr.bf16.gmra.mrb[0].mxu0 %v397
      %v637 = vpop.f32.mrb[0].mxu0
      %v638 = vadd.f32 0.0, %v637
      %v639 = vpop.f32.mrb[0].mxu0
      %v640 = vpop.f32.mrb[0].mxu0
      %v641 = vadd.f32 0.0, %v640
      %v642 = vpop.f32.mrb[0].mxu0
      %643 = vdwg.mxu0
      %v644 = vmul.f32 %v614, %v614
      %v645 = vmul.f32 %v617, %v617
      %v646 = vmul.f32 %v622, %v622
      %v647 = vmul.f32 %v625, %v625
      %v648 = vmul.f32 %v630, %v630
      %v649 = vmul.f32 %v633, %v633
      %v650 = vmul.f32 %v638, %v638
      %v651 = vmul.f32 %v641, %v641
      %v652 = vsel %vm476, %v644, 0.0
      %653 = vadd.xlane.f32.xlu0 %v652
      %v654 = vpop.xlane.xlu0 %653
      %v655 = vsel %vm476, %v645, 0.0
      %656 = vadd.xlane.f32.xlu0 %v655
      %v657 = vpop.xlane.xlu0 %656
      %v658 = vsel %vm476, %v646, 0.0
      %659 = vadd.xlane.f32.xlu0 %v658
      %v660 = vpop.xlane.xlu0 %659
      %v661 = vsel %vm476, %v647, 0.0
      %662 = vadd.xlane.f32.xlu0 %v661
      %v663 = vpop.xlane.xlu0 %662
      %v664 = vsel %vm476, %v648, 0.0
      %665 = vadd.xlane.f32.xlu0 %v664
      %v666 = vpop.xlane.xlu0 %665
      %v667 = vsel %vm476, %v649, 0.0
      %668 = vadd.xlane.f32.xlu0 %v667
      %v669 = vpop.xlane.xlu0 %668
      %v670 = vsel %vm476, %v650, 0.0
      %671 = vadd.xlane.f32.xlu0 %v670
      %v672 = vpop.xlane.xlu0 %671
      %v673 = vsel %vm476, %v651, 0.0
      %674 = vadd.xlane.f32.xlu0 %v673
      %v675 = vpop.xlane.xlu0 %674
      %v676 = vmax.f32 %v654, 1e-24
      %v677 = vmax.f32 %v657, 1e-24
      %v678 = vmax.f32 %v660, 1e-24
      %v679 = vmax.f32 %v663, 1e-24
      %v680 = vmax.f32 %v666, 1e-24
      %v681 = vmax.f32 %v669, 1e-24
      %v682 = vmax.f32 %v672, 1e-24
      %v683 = vmax.f32 %v675, 1e-24
      %v684 = vrsqrt.pop %v676
      %v685 = vrsqrt.pop %v677
      %v686 = vrsqrt.pop %v678
      %v687 = vrsqrt.pop %v679
      %v688 = vrsqrt.pop %v680
      %v689 = vrsqrt.pop %v681
      %v690 = vrsqrt.pop %v682
      %v691 = vrsqrt.pop %v683
      %v692 = vmul.f32 %v614, %v684
      %v693 = vmul.f32 %v617, %v685
      %v694 = vmul.f32 %v622, %v686
      %v695 = vmul.f32 %v625, %v687
      %v696 = vmul.f32 %v630, %v688
      %v697 = vmul.f32 %v633, %v689
      %v698 = vmul.f32 %v638, %v690
      %v699 = vmul.f32 %v641, %v691
      %v700 = vmul.f32 %v692, 0.5
      %v701 = vmul.f32 %v693, 0.5
      %v702 = vmul.f32 %v694, 0.5
      %v703 = vmul.f32 %v695, 0.5
      %v704 = vmul.f32 %v696, 0.5
      %v705 = vmul.f32 %v697, 0.5
      %v706 = vmul.f32 %v698, 0.5
      %v707 = vmul.f32 %v699, 0.5
      %v708 = vpack.c.bf16 %v701, %v700
      %v709 = vpack.c.bf16 %v703, %v702
      %v710 = vpack.c.bf16 %v705, %v704
      %v711 = vpack.c.bf16 %v707, %v706
      %v716 = vunpack.c.l.b16 %v708
      %v717 = vunpack.c.h.b16 %v708
      %v718 = vunpack.c.l.b16 %v709
      %v719 = vunpack.c.h.b16 %v709
      %v720 = vunpack.c.l.b16 %v710
      %v721 = vunpack.c.h.b16 %v710
      %v722 = vunpack.c.l.b16 %v711
      %v723 = vunpack.c.h.b16 %v711
      %v724 = vpack.c.b16 %v716, %v716
      %v725 = vpack.c.b16 %v717, %v717
      %v726 = vpack.c.b16 %v718, %v718
      %v727 = vpack.c.b16 %v719, %v719
      %v728 = vpack.c.b16 %v720, %v720
      %v729 = vpack.c.b16 %v721, %v721
      %v730 = vpack.c.b16 %v722, %v722
      %v731 = vpack.c.b16 %v723, %v723
      %s740 = scalar_lea.vmem %s235, 32
      %741 = vst.msk [vmem:[%s740] sm:$0xf] %vm565, %v724
      %742 = vst.msk [vmem:[%s740 + $0x4] sm:$0xf] %vm565, %v725
      %743 = vst.msk [vmem:[%s740 + $0x8] sm:$0xf] %vm565, %v726
      %744 = vst.msk [vmem:[%s740 + $0xc] sm:$0xf] %vm565, %v727
      %745 = vst.msk [vmem:[%s740 + $0x10] sm:$0xf] %vm565, %v728
      %746 = vst.msk [vmem:[%s740 + $0x14] sm:$0xf] %vm565, %v729
      %747 = vst.msk [vmem:[%s740 + $0x18] sm:$0xf] %vm565, %v730
      %748 = vst.msk [vmem:[%s740 + $0x1c] sm:$0xf] %vm565, %v731
      %s749 = scalar_lea.vmem %s3, 8
      %v750 = vld [vmem:[%s749] sm:$0xf]
      %v752 = vsel %vm399, %v750, 0
      %754 = vmatprep.subr.bf16.mxu0 0
      %755 = vmatpush1.bf16.msra.mxu0 %v752
      %756 = vmatprep.subr.bf16.mxu0 0
      %757 = vmatpush1.bf16.msra.mxu0 0
      %758 = vmatprep.subr.bf16.mxu0 0
      %759 = vmatpush1.bf16.msra.mxu0 0
      %760 = vmatprep.subr.bf16.mxu0 0
      %761 = vmatpush1.bf16.msra.mxu0 0
      %762 = vmatprep.subr.bf16.mxu0 0
      %763 = vmatpush1.bf16.msra.mxu0 0
      %764 = vmatprep.subr.bf16.mxu0 0
      %765 = vmatpush1.bf16.msra.mxu0 0
      %766 = vmatprep.subr.bf16.mxu0 0
      %767 = vmatpush1.bf16.msra.mxu0 0
      %768 = vmatprep.subr.bf16.mxu0 0
      %769 = vmatpush1.bf16.msra.mxu0 0
      %770 = vmatprep.subr.bf16.mxu0 0
      %771 = vmatpush1.bf16.msra.mxu0 0
      %772 = vmatprep.subr.bf16.mxu0 0
      %773 = vmatpush1.bf16.msra.mxu0 0
      %774 = vmatprep.subr.bf16.mxu0 0
      %775 = vmatpush1.bf16.msra.mxu0 0
      %776 = vmatprep.subr.bf16.mxu0 0
      %777 = vmatpush1.bf16.msra.mxu0 0
      %778 = vmatprep.subr.bf16.mxu0 0
      %779 = vmatpush1.bf16.msra.mxu0 0
      %780 = vmatprep.subr.bf16.mxu0 0
      %781 = vmatpush1.bf16.msra.mxu0 0
      %782 = vmatprep.subr.bf16.mxu0 0
      %783 = vmatpush1.bf16.msra.mxu0 0
      %784 = vmatprep.subr.bf16.mxu0 0
      %785 = vmatpush1.bf16.msra.mxu0 0
      %786 = vmatprep.mubr.bf16.mxu0 0
      %787 = vmatmul.mubr.bf16.gmra.mrb[0].mxu0 %v388
      %v788 = vpop.f32.mrb[0].mxu0
      %v789 = vadd.f32 0.0, %v788
      %v790 = vpop.f32.mrb[0].mxu0
      %v791 = vpop.f32.mrb[0].mxu0
      %v792 = vadd.f32 0.0, %v791
      %v793 = vpop.f32.mrb[0].mxu0
      %794 = vmatprep.mubr.bf16.mxu0 0
      %795 = vmatmul.mubr.bf16.gmra.mrb[0].mxu0 %v391
      %v796 = vpop.f32.mrb[0].mxu0
      %v797 = vadd.f32 0.0, %v796
      %v798 = vpop.f32.mrb[0].mxu0
      %v799 = vpop.f32.mrb[0].mxu0
      %v800 = vadd.f32 0.0, %v799
      %v801 = vpop.f32.mrb[0].mxu0
      %802 = vmatprep.mubr.bf16.mxu0 0
      %803 = vmatmul.mubr.bf16.gmra.mrb[0].mxu0 %v394
      %v804 = vpop.f32.mrb[0].mxu0
      %v805 = vadd.f32 0.0, %v804
      %v806 = vpop.f32.mrb[0].mxu0
      %v807 = vpop.f32.mrb[0].mxu0
      %v808 = vadd.f32 0.0, %v807
      %v809 = vpop.f32.mrb[0].mxu0
      %810 = vmatprep.mubr.bf16.mxu0 0
      %811 = vmatmul.mubr.bf16.gmra.mrb[0].mxu0 %v397
      %v812 = vpop.f32.mrb[0].mxu0
      %v813 = vadd.f32 0.0, %v812
      %v814 = vpop.f32.mrb[0].mxu0
      %v815 = vpop.f32.mrb[0].mxu0
      %v816 = vadd.f32 0.0, %v815
      %v817 = vpop.f32.mrb[0].mxu0
      %818 = vdwg.mxu0
      %v819 = vmul.f32 %v789, %v789
      %v820 = vmul.f32 %v792, %v792
      %v821 = vmul.f32 %v797, %v797
      %v822 = vmul.f32 %v800, %v800
      %v823 = vmul.f32 %v805, %v805
      %v824 = vmul.f32 %v808, %v808
      %v825 = vmul.f32 %v813, %v813
      %v826 = vmul.f32 %v816, %v816
      %v827 = vsel %vm476, %v819, 0.0
      %828 = vadd.xlane.f32.xlu0 %v827
      %v829 = vpop.xlane.xlu0 %828
      %v830 = vsel %vm476, %v820, 0.0
      %831 = vadd.xlane.f32.xlu0 %v830
      %v832 = vpop.xlane.xlu0 %831
      %v833 = vsel %vm476, %v821, 0.0
      %834 = vadd.xlane.f32.xlu0 %v833
      %v835 = vpop.xlane.xlu0 %834
      %v836 = vsel %vm476, %v822, 0.0
      %837 = vadd.xlane.f32.xlu0 %v836
      %v838 = vpop.xlane.xlu0 %837
      %v839 = vsel %vm476, %v823, 0.0
      %840 = vadd.xlane.f32.xlu0 %v839
      %v841 = vpop.xlane.xlu0 %840
      %v842 = vsel %vm476, %v824, 0.0
      %843 = vadd.xlane.f32.xlu0 %v842
      %v844 = vpop.xlane.xlu0 %843
      %v845 = vsel %vm476, %v825, 0.0
      %846 = vadd.xlane.f32.xlu0 %v845
      %v847 = vpop.xlane.xlu0 %846
      %v848 = vsel %vm476, %v826, 0.0
      %849 = vadd.xlane.f32.xlu0 %v848
      %v850 = vpop.xlane.xlu0 %849
      %v851 = vmax.f32 %v829, 1e-24
      %v852 = vmax.f32 %v832, 1e-24
      %v853 = vmax.f32 %v835, 1e-24
      %v854 = vmax.f32 %v838, 1e-24
      %v855 = vmax.f32 %v841, 1e-24
      %v856 = vmax.f32 %v844, 1e-24
      %v857 = vmax.f32 %v847, 1e-24
      %v858 = vmax.f32 %v850, 1e-24
      %v859 = vrsqrt.pop %v851
      %v860 = vrsqrt.pop %v852
      %v861 = vrsqrt.pop %v853
      %v862 = vrsqrt.pop %v854
      %v863 = vrsqrt.pop %v855
      %v864 = vrsqrt.pop %v856
      %v865 = vrsqrt.pop %v857
      %v866 = vrsqrt.pop %v858
      %v867 = vmul.f32 %v789, %v859
      %v868 = vmul.f32 %v792, %v860
      %v869 = vmul.f32 %v797, %v861
      %v870 = vmul.f32 %v800, %v862
      %v871 = vmul.f32 %v805, %v863
      %v872 = vmul.f32 %v808, %v864
      %v873 = vmul.f32 %v813, %v865
      %v874 = vmul.f32 %v816, %v866
      %v875 = vmul.f32 %v867, 0.5
      %v876 = vmul.f32 %v868, 0.5
      %v877 = vmul.f32 %v869, 0.5
      %v878 = vmul.f32 %v870, 0.5
      %v879 = vmul.f32 %v871, 0.5
      %v880 = vmul.f32 %v872, 0.5
      %v881 = vmul.f32 %v873, 0.5
      %v882 = vmul.f32 %v874, 0.5
      %v883 = vpack.c.bf16 %v876, %v875
      %v884 = vpack.c.bf16 %v878, %v877
      %v885 = vpack.c.bf16 %v880, %v879
      %v886 = vpack.c.bf16 %v882, %v881
      %v891 = vunpack.c.l.b16 %v883
      %v892 = vunpack.c.h.b16 %v883
      %v893 = vunpack.c.l.b16 %v884
      %v894 = vunpack.c.h.b16 %v884
      %v895 = vunpack.c.l.b16 %v885
      %v896 = vunpack.c.h.b16 %v885
      %v897 = vunpack.c.l.b16 %v886
      %v898 = vunpack.c.h.b16 %v886
      %v899 = vpack.c.b16 %v891, %v891
      %v900 = vpack.c.b16 %v892, %v892
      %v901 = vpack.c.b16 %v893, %v893
      %v902 = vpack.c.b16 %v894, %v894
      %v903 = vpack.c.b16 %v895, %v895
      %v904 = vpack.c.b16 %v896, %v896
      %v905 = vpack.c.b16 %v897, %v897
      %v906 = vpack.c.b16 %v898, %v898
      %s915 = scalar_lea.vmem %s235, 64
      %916 = vst.msk [vmem:[%s915] sm:$0xf] %vm565, %v899
      %917 = vst.msk [vmem:[%s915 + $0x4] sm:$0xf] %vm565, %v900
      %918 = vst.msk [vmem:[%s915 + $0x8] sm:$0xf] %vm565, %v901
      %919 = vst.msk [vmem:[%s915 + $0xc] sm:$0xf] %vm565, %v902
      %920 = vst.msk [vmem:[%s915 + $0x10] sm:$0xf] %vm565, %v903
      %921 = vst.msk [vmem:[%s915 + $0x14] sm:$0xf] %vm565, %v904
      %922 = vst.msk [vmem:[%s915 + $0x18] sm:$0xf] %vm565, %v905
      %923 = vst.msk [vmem:[%s915 + $0x1c] sm:$0xf] %vm565, %v906
      %s924 = scalar_lea.vmem %s3, 12
      %v925 = vld [vmem:[%s924] sm:$0xf]
      %v927 = vsel %vm399, %v925, 0
      %929 = vmatprep.subr.bf16.mxu0 0
      %930 = vmatpush1.bf16.msra.mxu0 %v927
      %931 = vmatprep.subr.bf16.mxu0 0
      %932 = vmatpush1.bf16.msra.mxu0 0
      %933 = vmatprep.subr.bf16.mxu0 0
      %934 = vmatpush1.bf16.msra.mxu0 0
      %935 = vmatprep.subr.bf16.mxu0 0
      %936 = vmatpush1.bf16.msra.mxu0 0
      %937 = vmatprep.subr.bf16.mxu0 0
      %938 = vmatpush1.bf16.msra.mxu0 0
      %939 = vmatprep.subr.bf16.mxu0 0
      %940 = vmatpush1.bf16.msra.mxu0 0
      %941 = vmatprep.subr.bf16.mxu0 0
      %942 = vmatpush1.bf16.msra.mxu0 0
      %943 = vmatprep.subr.bf16.mxu0 0
      %944 = vmatpush1.bf16.msra.mxu0 0
      %945 = vmatprep.subr.bf16.mxu0 0
      %946 = vmatpush1.bf16.msra.mxu0 0
      %947 = vmatprep.subr.bf16.mxu0 0
      %948 = vmatpush1.bf16.msra.mxu0 0
      %949 = vmatprep.subr.bf16.mxu0 0
      %950 = vmatpush1.bf16.msra.mxu0 0
      %951 = vmatprep.subr.bf16.mxu0 0
      %952 = vmatpush1.bf16.msra.mxu0 0
      %953 = vmatprep.subr.bf16.mxu0 0
      %954 = vmatpush1.bf16.msra.mxu0 0
      %955 = vmatprep.subr.bf16.mxu0 0
      %956 = vmatpush1.bf16.msra.mxu0 0
      %957 = vmatprep.subr.bf16.mxu0 0
      %958 = vmatpush1.bf16.msra.mxu0 0
      %959 = vmatprep.subr.bf16.mxu0 0
      %960 = vmatpush1.bf16.msra.mxu0 0
      %961 = vmatprep.mubr.bf16.mxu0 0
      %962 = vmatmul.mubr.bf16.gmra.mrb[0].mxu0 %v388
      %v963 = vpop.f32.mrb[0].mxu0
      %v964 = vadd.f32 0.0, %v963
      %v965 = vpop.f32.mrb[0].mxu0
      %v966 = vpop.f32.mrb[0].mxu0
      %v967 = vadd.f32 0.0, %v966
      %v968 = vpop.f32.mrb[0].mxu0
      %969 = vmatprep.mubr.bf16.mxu0 0
      %970 = vmatmul.mubr.bf16.gmra.mrb[0].mxu0 %v391
      %v971 = vpop.f32.mrb[0].mxu0
      %v972 = vadd.f32 0.0, %v971
      %v973 = vpop.f32.mrb[0].mxu0
      %v974 = vpop.f32.mrb[0].mxu0
      %v975 = vadd.f32 0.0, %v974
      %v976 = vpop.f32.mrb[0].mxu0
      %977 = vmatprep.mubr.bf16.mxu0 0
      %978 = vmatmul.mubr.bf16.gmra.mrb[0].mxu0 %v394
      %v979 = vpop.f32.mrb[0].mxu0
      %v980 = vadd.f32 0.0, %v979
      %v981 = vpop.f32.mrb[0].mxu0
      %v982 = vpop.f32.mrb[0].mxu0
      %v983 = vadd.f32 0.0, %v982
      %v984 = vpop.f32.mrb[0].mxu0
      %985 = vmatprep.mubr.bf16.mxu0 0
      %986 = vmatmul.mubr.bf16.gmra.mrb[0].mxu0 %v397
      %v987 = vpop.f32.mrb[0].mxu0
      %v988 = vadd.f32 0.0, %v987
      %v989 = vpop.f32.mrb[0].mxu0
      %v990 = vpop.f32.mrb[0].mxu0
      %v991 = vadd.f32 0.0, %v990
      %v992 = vpop.f32.mrb[0].mxu0
      %993 = vdwg.mxu0
      %v994 = vmul.f32 %v964, %v964
      %v995 = vmul.f32 %v967, %v967
      %v996 = vmul.f32 %v972, %v972
      %v997 = vmul.f32 %v975, %v975
      %v998 = vmul.f32 %v980, %v980
      %v999 = vmul.f32 %v983, %v983
      %v1000 = vmul.f32 %v988, %v988
      %v1001 = vmul.f32 %v991, %v991
      %v1002 = vsel %vm476, %v994, 0.0
      %1003 = vadd.xlane.f32.xlu0 %v1002
      %v1004 = vpop.xlane.xlu0 %1003
      %v1005 = vsel %vm476, %v995, 0.0
      %1006 = vadd.xlane.f32.xlu0 %v1005
      %v1007 = vpop.xlane.xlu0 %1006
      %v1008 = vsel %vm476, %v996, 0.0
      %1009 = vadd.xlane.f32.xlu0 %v1008
      %v1010 = vpop.xlane.xlu0 %1009
      %v1011 = vsel %vm476, %v997, 0.0
      %1012 = vadd.xlane.f32.xlu0 %v1011
      %v1013 = vpop.xlane.xlu0 %1012
      %v1014 = vsel %vm476, %v998, 0.0
      %1015 = vadd.xlane.f32.xlu0 %v1014
      %v1016 = vpop.xlane.xlu0 %1015
      %v1017 = vsel %vm476, %v999, 0.0
      %1018 = vadd.xlane.f32.xlu0 %v1017
      %v1019 = vpop.xlane.xlu0 %1018
      %v1020 = vsel %vm476, %v1000, 0.0
      %1021 = vadd.xlane.f32.xlu0 %v1020
      %v1022 = vpop.xlane.xlu0 %1021
      %v1023 = vsel %vm476, %v1001, 0.0
      %1024 = vadd.xlane.f32.xlu0 %v1023
      %v1025 = vpop.xlane.xlu0 %1024
      %v1026 = vmax.f32 %v1004, 1e-24
      %v1027 = vmax.f32 %v1007, 1e-24
      %v1028 = vmax.f32 %v1010, 1e-24
      %v1029 = vmax.f32 %v1013, 1e-24
      %v1030 = vmax.f32 %v1016, 1e-24
      %v1031 = vmax.f32 %v1019, 1e-24
      %v1032 = vmax.f32 %v1022, 1e-24
      %v1033 = vmax.f32 %v1025, 1e-24
      %v1034 = vrsqrt.pop %v1026
      %v1035 = vrsqrt.pop %v1027
      %v1036 = vrsqrt.pop %v1028
      %v1037 = vrsqrt.pop %v1029
      %v1038 = vrsqrt.pop %v1030
      %v1039 = vrsqrt.pop %v1031
      %v1040 = vrsqrt.pop %v1032
      %v1041 = vrsqrt.pop %v1033
      %v1042 = vmul.f32 %v964, %v1034
      %v1043 = vmul.f32 %v967, %v1035
      %v1044 = vmul.f32 %v972, %v1036
      %v1045 = vmul.f32 %v975, %v1037
      %v1046 = vmul.f32 %v980, %v1038
      %v1047 = vmul.f32 %v983, %v1039
      %v1048 = vmul.f32 %v988, %v1040
      %v1049 = vmul.f32 %v991, %v1041
      %v1050 = vmul.f32 %v1042, 0.5
      %v1051 = vmul.f32 %v1043, 0.5
      %v1052 = vmul.f32 %v1044, 0.5
      %v1053 = vmul.f32 %v1045, 0.5
      %v1054 = vmul.f32 %v1046, 0.5
      %v1055 = vmul.f32 %v1047, 0.5
      %v1056 = vmul.f32 %v1048, 0.5
      %v1057 = vmul.f32 %v1049, 0.5
      %v1058 = vpack.c.bf16 %v1051, %v1050
      %v1059 = vpack.c.bf16 %v1053, %v1052
      %v1060 = vpack.c.bf16 %v1055, %v1054
      %v1061 = vpack.c.bf16 %v1057, %v1056
      %v1066 = vunpack.c.l.b16 %v1058
      %v1067 = vunpack.c.h.b16 %v1058
      %v1068 = vunpack.c.l.b16 %v1059
      %v1069 = vunpack.c.h.b16 %v1059
      %v1070 = vunpack.c.l.b16 %v1060
      %v1071 = vunpack.c.h.b16 %v1060
      %v1072 = vunpack.c.l.b16 %v1061
      %v1073 = vunpack.c.h.b16 %v1061
      %v1074 = vpack.c.b16 %v1066, %v1066
      %v1075 = vpack.c.b16 %v1067, %v1067
      %v1076 = vpack.c.b16 %v1068, %v1068
      %v1077 = vpack.c.b16 %v1069, %v1069
      %v1078 = vpack.c.b16 %v1070, %v1070
      %v1079 = vpack.c.b16 %v1071, %v1071
      %v1080 = vpack.c.b16 %v1072, %v1072
      %v1081 = vpack.c.b16 %v1073, %v1073
      %s1090 = scalar_lea.vmem %s235, 96
      %1091 = vst.msk [vmem:[%s1090] sm:$0xf] %vm565, %v1074
      %1092 = vst.msk [vmem:[%s1090 + $0x4] sm:$0xf] %vm565, %v1075
      %1093 = vst.msk [vmem:[%s1090 + $0x8] sm:$0xf] %vm565, %v1076
      %1094 = vst.msk [vmem:[%s1090 + $0xc] sm:$0xf] %vm565, %v1077
      %1095 = vst.msk [vmem:[%s1090 + $0x10] sm:$0xf] %vm565, %v1078
      %1096 = vst.msk [vmem:[%s1090 + $0x14] sm:$0xf] %vm565, %v1079
      %1097 = vst.msk [vmem:[%s1090 + $0x18] sm:$0xf] %vm565, %v1080
      %1098 = vst.msk [vmem:[%s1090 + $0x1c] sm:$0xf] %vm565, %v1081
      %s1099 = smul.u32 8, %s20
      %p1100 = scmp.lt.s32.totalorder %s19, 1
      %s1101 = scalar_select %p1100, %s19, 1
      %p1102 = scmp.lt.s32.totalorder %s1099, 7
      %s1103 = scalar_select %p1102, %s1099, 7
      %s1104 = smul.addr %s1101, 32
      %s1105 = sadd.s32 %s1103, %s1104
      %s1106 = smul.addr %s1105, 4
      %s1107 = scalar_lea.vmem %s4, %s1106
      // Predicated region
      $region37: #{tpu_custom_call.1} parent=35 // pred_check
        %p1108 = pneg %p138
      $region38: #{tpu_custom_call.1} parent=35 // pred_check_branch
        %1110 = sbr.rel (%p1108) target = $region40
      $region39: #{tpu_custom_call.1} parent=35 // pred_region
        %s1111 = smul.u32 8, %s20
      $region40: #{tpu_custom_call.1} parent=35 // pred_fallthru
        _
    $region36: #{tpu_custom_call.1} parent=5 // pred_fallthru
      _
    %p1112 = scmp.le.s32.totalorder 2, %s10
    // Predicated region
    $region41: #{tpu_custom_call.1} parent=5 // pred_check
      %p1113 = pneg %p1112
    $region42: #{tpu_custom_call.1} parent=5 // pred_check_branch
      %1115 = sbr.rel (%p1113) target = $region44
    $region43: #{tpu_custom_call.1} parent=5 // pred_region
      %s1116 = ssub.s32 %s10, 2
      // Predicated region
      $region45: #{tpu_custom_call.1} parent=43 // pred_check
        %p1117 = pneg %p144
      $region46: #{tpu_custom_call.1} parent=43 // pred_check_branch
        %1119 = sbr.rel (%p1117) target = $region48
      $region47: #{tpu_custom_call.1} parent=43 // pred_region
        %s1120 = smul.u32 8, %s22
        %p1121 = scmp.lt.s32.totalorder %s21, 1
        %s1122 = scalar_select %p1121, %s21, 1
        %p1123 = scmp.lt.s32.totalorder %s1120, 7
        %s1124 = scalar_select %p1123, %s1120, 7
        %s1125 = smul.addr %s1122, 32
        %s1126 = sadd.s32 %s1124, %s1125
        %s1127 = smul.addr %s1126, 4
        %s1128 = scalar_lea.vmem %s4, %s1127
      $region48: #{tpu_custom_call.1} parent=43 // pred_fallthru
        _
    $region44: #{tpu_custom_call.1} parent=5 // pred_fallthru
      _
  $region6: #{tpu_custom_call.1} parent=0 // loop_footer
    %s14 = sadd.s32 1, %s10
  $region7: #{tpu_custom_call.1} parent=0 // loop_footer_branch
    %9 = sbr.rel target = $region3
  $region8: #{tpu_custom_call.1} parent=0 // loop_exit
    _

</llo_original>
